<compile_context>
chip_gen: v7x
topology: tpu7x:2x2x1
jax: 0.10.0
libtpu: 0.0.40
codegen_flags: <defaults>
</compile_context>

<pallas_src>
import functools

import jax
import jax.numpy as jnp
from jax.experimental import pallas as pl
from jax.experimental.pallas import tpu as pltpu


FEAT_DIM = 64   # per-point feature width of the stand-in PointNetFeatureExtractor
NUM_PC = 5      # use_pca=True -> num_pc = 5
IN_CH = 8       # xyz (3) zero-padded to 8 channels for a sublane-aligned bf16 matmul
BN_EPS = 1e-5


def _choose_tile(n):
    """Point-axis (lane) tile.  The wrapper pads n to a multiple of 128, so one
    of these always divides; big tiles amortize the ~0.35us per-step overhead
    while per-step VMEM residency stays only a few MiB even at 8192."""
    for t in (8192, 4096, 2048, 1024, 512, 256, 128):
        if n % t == 0:
            return t
    return n  # unreachable after wrapper-side padding


# ----------------------------------------------------------------------------
# Pass 1: fused pointwise MLP + deferred global max pool  (x:(2B,8,N) -> g:(2B,64))
# ----------------------------------------------------------------------------
def _stage1_kernel(x_ref, wa_ref, ta_ref, ws_ref, ts_ref, g_ref, acc_ref):
    j = pl.program_id(1)

    @pl.when(j == 0)
    def _():
        # ReLU outputs are >= 0, so a zero init is exact for the max pool.
        acc_ref[...] = jnp.zeros_like(acc_ref)

    xT = x_ref[...]                                                   # (8, TN) bf16
    # conv 3->64 (BN scale folded into wa, zero-padded K=8) + bias + ReLU,
    # bf16 cast fused so only one (64,TN) copy of h stays live.
    h = jnp.dot(wa_ref[...], xT, preferred_element_type=jnp.float32)
    h_bf = jnp.maximum(h + ta_ref[...], 0.0).astype(jnp.bfloat16)     # (64, TN)
    # conv 64->64 (BN scale folded into ws) + bias + ReLU
    s = jnp.dot(ws_ref[...], h_bf, preferred_element_type=jnp.float32)
    s = jnp.maximum(s + ts_ref[...], 0.0)                             # (64, TN) f32

    # Deferred cross-lane max: elementwise vmax of 128-lane chunks into a
    # (64,128) running block; the XLU reduce + narrow store happen once per b.
    run = acc_ref[...]
    tn = s.shape[1]
    for c in range(tn // 128):
        run = jnp.maximum(run, s[:, c * 128:(c + 1) * 128])
    acc_ref[...] = run

    @pl.when(j == pl.num_programs(1) - 1)
    def _():
        g_ref[...] = jnp.max(run, axis=1, keepdims=True)              # (64, 1)


def pointnet_global_feature(x_all, p):
    EB, C, N = x_all.shape
    TN = _choose_tile(N)
    NT = N // TN
    gmax = pl.pallas_call(
        _stage1_kernel,
        out_shape=jax.ShapeDtypeStruct((EB, FEAT_DIM, 1), jnp.float32),
        grid=(EB, NT),
        in_specs=[
            pl.BlockSpec((None, C, TN), lambda b, j: (b, 0, j)),
            pl.BlockSpec((FEAT_DIM, C), lambda b, j: (0, 0)),
            pl.BlockSpec((FEAT_DIM, 1), lambda b, j: (0, 0)),
            pl.BlockSpec((FEAT_DIM, FEAT_DIM), lambda b, j: (0, 0)),
            pl.BlockSpec((FEAT_DIM, 1), lambda b, j: (0, 0)),
        ],
        out_specs=pl.BlockSpec((None, FEAT_DIM, 1), lambda b, j: (b, 0, 0)),
        scratch_shapes=[pltpu.VMEM((FEAT_DIM, 128), jnp.float32)],
        compiler_params=pltpu.CompilerParams(
            dimension_semantics=("parallel", "arbitrary")),
    )(x_all, p["waT"], p["taT"], p["wsT"], p["tsT"])
    return gmax[:, :, 0]                                              # (2B, 64)


# ----------------------------------------------------------------------------
# Pass 2: feature transform + Wb + folded PCA/conv1 head -> lane-dense (1, TN)
# ----------------------------------------------------------------------------
def _head_kernel(x_ref, wa_ref, ta_ref, wb_ref, tb_ref, wh_ref, th_ref, y_ref):
    xT = x_ref[...]                                                   # (8, TN) bf16
    # recompute h (cheaper than storing the (2B,64,N) activation in HBM)
    h = jnp.dot(wa_ref[...], xT, preferred_element_type=jnp.float32)
    h_bf = jnp.maximum(h + ta_ref[...], 0.0).astype(jnp.bfloat16)     # (64, TN)
    # (trans_feat @ Wb*diag(sb)) pre-composed outside; bias+ReLU epilogue here
    h2 = jnp.dot(wb_ref[...], h_bf, preferred_element_type=jnp.float32)
    h2_bf = jnp.maximum(h2 + tb_ref[...], 0.0).astype(jnp.bfloat16)   # (64, TN)
    # folded PCA(64->5) ∘ conv1(5->1)+BN as one bf16 MXU matvec (head weight
    # zero-padded to 8 rows; row 0 is real).  Rides MXU slack instead of a
    # VPU mul + sublane/XLU reduce, since VALU is the expected binding slot.
    yh = jnp.dot(wh_ref[...], h2_bf, preferred_element_type=jnp.float32)  # (8, TN)
    y_ref[...] = jnp.maximum(yh[0:1, :] + th_ref[...], 0.0)           # (1, TN)


def pointnet_head(x_all, wb_eff_T, p):
    EB, C, N = x_all.shape
    TN = _choose_tile(N)
    NT = N // TN
    return pl.pallas_call(
        _head_kernel,
        out_shape=jax.ShapeDtypeStruct((EB, 1, N), jnp.float32),
        grid=(EB, NT),
        in_specs=[
            pl.BlockSpec((None, C, TN), lambda b, j: (b, 0, j)),
            pl.BlockSpec((FEAT_DIM, C), lambda b, j: (0, 0)),
            pl.BlockSpec((FEAT_DIM, 1), lambda b, j: (0, 0)),
            pl.BlockSpec((None, FEAT_DIM, FEAT_DIM), lambda b, j: (b, 0, 0)),
            pl.BlockSpec((FEAT_DIM, 1), lambda b, j: (0, 0)),
            pl.BlockSpec((8, FEAT_DIM), lambda b, j: (0, 0)),
            pl.BlockSpec((1, 1), lambda b, j: (0, 0)),
        ],
        out_specs=pl.BlockSpec((None, 1, TN), lambda b, j: (b, 0, j)),
        compiler_params=pltpu.CompilerParams(
            dimension_semantics=("parallel", "parallel")),
    )(x_all, p["waT"], p["taT"], wb_eff_T, p["tbT"], p["wheadT"], p["thead"])


# ----------------------------------------------------------------------------
# Parameters (deterministic stand-in weights; BN scales & head folded; transposed)
# ----------------------------------------------------------------------------
def init_params(key, num_pts, feat_dim=FEAT_DIM, num_pc=NUM_PC):
    ks = jax.random.split(key, 8)

    def dense(k, i, o, scale=0.1):
        kw, kb = jax.random.split(k)
        w = jax.random.normal(kw, (i, o), jnp.float32) * scale
        b = jax.random.normal(kb, (o,), jnp.float32) * scale
        return w, b

    def bn_fold(bias, c):
        # eval-mode BatchNorm1d with default init: gamma=1, beta=0, mean=0, var=1
        gamma = jnp.ones((c,), jnp.float32)
        beta = jnp.zeros((c,), jnp.float32)
        mean = jnp.zeros((c,), jnp.float32)
        var = jnp.ones((c,), jnp.float32)
        s = gamma / jnp.sqrt(var + BN_EPS)
        t = (bias - mean) * s + beta
        return s, t

    # PointNetFeatureExtractor (frozen, stand-in)
    Wa, ba = dense(ks[0], 3, feat_dim)
    sa, ta = bn_fold(ba, feat_dim)
    Ws, bs = dense(ks[1], feat_dim, feat_dim)
    ss, ts = bn_fold(bs, feat_dim)
    Wt, bt = dense(ks[2], feat_dim, feat_dim * feat_dim, scale=0.01)
    Wb, bb = dense(ks[3], feat_dim, feat_dim)
    sb, tb = bn_fold(bb, feat_dim)

    # PCA (frozen): project (x - mean) onto components
    comps = jax.random.normal(ks[4], (num_pc, feat_dim), jnp.float32) * 0.1
    pca_mean = jax.random.normal(ks[5], (feat_dim,), jnp.float32) * 0.1
    W_pca = comps.T                                    # (feat_dim, num_pc)
    pca_shift = -(pca_mean[None, :] @ W_pca)[0]        # fold mean subtraction

    # conv1(num_pc -> 1, kernel 1) + bn1
    W1, b1 = dense(ks[6], num_pc, 1)
    s1, t1 = bn_fold(b1, 1)

    # fc: Linear(2*num_pts, 7)
    W_fc, b_fc = dense(ks[7], 2 * num_pts, 7)

    col = lambda v: v.reshape(feat_dim, 1).astype(jnp.float32)

    # BN-scale folds (exact affine folds): W' = diag(s) @ W^T
    waT = jnp.zeros((feat_dim, IN_CH), jnp.float32).at[:, :3].set(sa[:, None] * Wa.T)
    wsT = ss[:, None] * Ws.T

    # Exact algebraic fold of PCA ∘ conv1/bn1 (both affine, no nonlinearity between)
    w_head = (W_pca @ W1) * s1[0]                                  # (feat_dim, 1)
    t_head = ((pca_shift @ W1)[0] * s1[0] + t1[0]).reshape(1, 1)   # (1, 1)
    # pad the head row to 8 MXU sublanes (rows 1..7 are zero; row 0 is real)
    w_head_rows = jnp.zeros((8, feat_dim), jnp.float32).at[0].set(w_head[:, 0])

    return dict(
        # Pallas kernel weights: channels on sublanes; all matmuls in bf16
        waT=waT.astype(jnp.bfloat16), taT=col(ta),
        wsT=wsT.astype(jnp.bfloat16), tsT=col(ts),
        tbT=col(tb),
        wheadT=w_head_rows.astype(jnp.bfloat16), thead=t_head.astype(jnp.float32),
        # Small tail ops left to XLA + per-call pre-composition
        Wt=Wt, bt=bt,
        Wb_s=Wb * sb[None, :],          # BN scale folded into Wb (exact)
        W_fc=W_fc, b_fc=b_fc,
    )


# ----------------------------------------------------------------------------
# Forward pass
# ----------------------------------------------------------------------------
def deep_pose_estimator_forward(pcd1, pcd2, params):
    B, _, N = pcd1.shape
    # Shared feature extractor: run both clouds as one batch (halves launches).
    x_all = jnp.concatenate([pcd1, pcd2], axis=0).astype(jnp.float32)   # (2B, 3, N)

    # Pad the point axis to a multiple of 128 by replicating the last point:
    # exact for the global max pool (duplicates don't change a max), and the
    # padded head columns are sliced away below.  Keeps every block lane-dense
    # and fixes the padded-lane max-pool hazard for N not divisible by 128.
    n_pad = -(-N // 128) * 128
    if n_pad != N:
        x_all = jnp.pad(x_all, ((0, 0), (0, 0), (0, n_pad - N)), mode="edge")
    # Zero-pad channels 3->8 (weights have matching zero columns, exact) and
    # cast to bf16 once here: sublane-aligned bf16 K=8 first matmul, half the
    # per-point HBM traffic, no in-kernel cast.
    x_all = jnp.pad(x_all, ((0, 0), (0, IN_CH - 3), (0, 0))).astype(jnp.bfloat16)

    # Pass 1 (Pallas): pointwise MLP + deferred global max pool.
    g = pointnet_global_feature(x_all, params)                           # (2B, 64)

    # STN fc tail (M=2B<8 sublanes, N=4096): MXU-hostile, leave to XLA.
    t = g @ params["Wt"] + params["bt"]
    trans_feat = (t.reshape(2 * B, FEAT_DIM, FEAT_DIM)
                  + jnp.eye(FEAT_DIM, dtype=jnp.float32)[None])

    # Pre-compose feature transform with (Wb * diag(sb)) -- exact affine fold;
    # bias + ReLU applied in-kernel.
    # TODO(synk): wb_eff (which embeds the STN output) and h both run in bf16;
    #   keep wb_eff in f32 if pose error vs an f32 reference regresses.
    wb_eff = jnp.einsum("bij,jk->bik", trans_feat, params["Wb_s"])       # (2B, 64, 64)
    wb_eff_T = jnp.transpose(wb_eff, (0, 2, 1)).astype(jnp.bfloat16)

    # Pass 2 (Pallas): transform + conv(64->64)+BN+ReLU + folded PCA/conv1 head.
    y = pointnet_head(x_all, wb_eff_T, params)                           # (2B, 1, n_pad)
    y = y[:, 0, :N]                                                      # (2B, N)

    # torch.cat(dim=2) -> permute -> flatten  ==  [y1_b | y2_b] per batch row.
    combined = jnp.concatenate([y[:B], y[B:]], axis=1)                   # (B, 2N)
    # Final fc (M=B, N=7): tiny, leave to XLA.
    pose = combined @ params["W_fc"] + params["b_fc"]                    # (B, 7)
    return pose, trans_feat[:B], trans_feat[B:]


if __name__ == "__main__":
    key = jax.random.PRNGKey(0)
    B, num_pts = 2, 64
    k1, k2, kp = jax.random.split(key, 3)
    pcd1 = jax.random.normal(k1, (B, 3, num_pts), jnp.float32)
    pcd2 = jax.random.normal(k2, (B, 3, num_pts), jnp.float32)
    params = init_params(kp, num_pts)

    fwd = jax.jit(functools.partial(deep_pose_estimator_forward, params=params))
    pose_vec, trans_feat_1, trans_feat_2 = fwd(pcd1, pcd2)
    jax.block_until_ready((pose_vec, trans_feat_1, trans_feat_2))

    assert pose_vec.shape == (B, 7)
    assert trans_feat_1.shape == (B, FEAT_DIM, FEAT_DIM)
    assert trans_feat_2.shape == (B, FEAT_DIM, FEAT_DIM)
    print("KERNEL_OK")
</pallas_src>

<mosaic_0001>
module attributes {stable_mosaic.version = 11 : i64} {
  func.func @_stage1_kernel(%arg0: i32, %arg1: i32, %arg2: memref<1x8x128xbf16, #tpu.memory_space<vmem>>, %arg3: memref<64x8xbf16, #tpu.memory_space<vmem>>, %arg4: memref<64x1xf32, #tpu.memory_space<vmem>>, %arg5: memref<64x64xbf16, #tpu.memory_space<vmem>>, %arg6: memref<64x1xf32, #tpu.memory_space<vmem>>, %arg7: memref<1x64x1xf32, #tpu.memory_space<vmem>>, %arg8: memref<64x128xf32, #tpu.memory_space<vmem>>) attributes {dimension_semantics = [#tpu.dimension_semantics<parallel>, #tpu.dimension_semantics<arbitrary>], iteration_bounds = array<i64: 4, 1>, scalar_prefetch = 0 : i64, scratch_operands = 1 : i64, tpu.core_type = #tpu.core_type<tc>, window_params = [{transform_indices = @transform_0, window_bounds = array<i64: 1, 8, 128>}, {pipeline_mode = #tpu.pipeline_mode<synchronous>, transform_indices = @transform_1, window_bounds = array<i64: 64, 8>}, {pipeline_mode = #tpu.pipeline_mode<synchronous>, transform_indices = @transform_2, window_bounds = array<i64: 64, 1>}, {pipeline_mode = #tpu.pipeline_mode<synchronous>, transform_indices = @transform_3, window_bounds = array<i64: 64, 64>}, {pipeline_mode = #tpu.pipeline_mode<synchronous>, transform_indices = @transform_4, window_bounds = array<i64: 64, 1>}, {transform_indices = @transform_5, window_bounds = array<i64: 1, 64, 1>}]} {
    %c0_i32 = arith.constant 0 : i32
    %0 = arith.cmpi eq, %arg1, %c0_i32 : i32
    %1 = arith.extui %0 : i1 to i32
    %c0_i32_0 = arith.constant 0 : i32
    %2 = arith.cmpi ne, %1, %c0_i32_0 : i32
    scf.if %2 {
      %cst_20 = arith.constant 0.000000e+00 : f32
      %26 = vector.broadcast %cst_20 : f32 to vector<64x128xf32>
      %c0_21 = arith.constant 0 : index
      %c0_22 = arith.constant 0 : index
      %27 = vector.load %arg8[%c0_21, %c0_22] : memref<64x128xf32, #tpu.memory_space<vmem>>, vector<64x128xf32>
      tpu.vector_store %arg8[%c0_21, %c0_22], %26 {strides = array<i32>} : memref<64x128xf32, #tpu.memory_space<vmem>>, vector<64x128xf32>,
    } else {
    }
    %c0 = arith.constant 0 : index
    %c0_1 = arith.constant 0 : index
    %c0_2 = arith.constant 0 : index
    %3 = vector.load %arg2[%c0, %c0_1, %c0_2] : memref<1x8x128xbf16, #tpu.memory_space<vmem>>, vector<1x8x128xbf16>
    %4 = vector.shape_cast %3 : vector<1x8x128xbf16> to vector<8x128xbf16>
    %c0_3 = arith.constant 0 : index
    %c0_4 = arith.constant 0 : index
    %5 = vector.load %arg3[%c0_3, %c0_4] : memref<64x8xbf16, #tpu.memory_space<vmem>>, vector<64x8xbf16>
    %cst = arith.constant dense<0.000000e+00> : vector<64x128xf32>
    %6 = tpu.matmul %5, %4, %cst {dimension_numbers = #tpu.dot_dimension_numbers<[1], [0], [0], [1], [0, 0, 1, 1], [], []>} : vector<64x8xbf16>, vector<8x128xbf16>, vector<64x128xf32> -> vector<64x128xf32>
    %c0_5 = arith.constant 0 : index
    %c0_6 = arith.constant 0 : index
    %7 = vector.load %arg4[%c0_5, %c0_6] : memref<64x1xf32, #tpu.memory_space<vmem>>, vector<64x1xf32>
    %8 = vector.broadcast %7 : vector<64x1xf32> to vector<64x128xf32>
    %9 = arith.addf %6, %8 : vector<64x128xf32>
    %cst_7 = arith.constant 0.000000e+00 : f32
    %10 = vector.broadcast %cst_7 : f32 to vector<64x128xf32>
    %11 = arith.maximumf %9, %10 : vector<64x128xf32>
    %12 = arith.truncf %11 : vector<64x128xf32> to vector<64x128xbf16>
    %c0_8 = arith.constant 0 : index
    %c0_9 = arith.constant 0 : index
    %13 = vector.load %arg5[%c0_8, %c0_9] : memref<64x64xbf16, #tpu.memory_space<vmem>>, vector<64x64xbf16>
    %cst_10 = arith.constant dense<0.000000e+00> : vector<64x128xf32>
    %14 = tpu.matmul %13, %12, %cst_10 {dimension_numbers = #tpu.dot_dimension_numbers<[1], [0], [0], [1], [0, 0, 1, 1], [], []>} : vector<64x64xbf16>, vector<64x128xbf16>, vector<64x128xf32> -> vector<64x128xf32>
    %c0_11 = arith.constant 0 : index
    %c0_12 = arith.constant 0 : index
    %15 = vector.load %arg6[%c0_11, %c0_12] : memref<64x1xf32, #tpu.memory_space<vmem>>, vector<64x1xf32>
    %16 = vector.broadcast %15 : vector<64x1xf32> to vector<64x128xf32>
    %17 = arith.addf %14, %16 : vector<64x128xf32>
    %cst_13 = arith.constant 0.000000e+00 : f32
    %18 = vector.broadcast %cst_13 : f32 to vector<64x128xf32>
    %19 = arith.maximumf %17, %18 : vector<64x128xf32>
    %c0_14 = arith.constant 0 : index
    %c0_15 = arith.constant 0 : index
    %20 = vector.load %arg8[%c0_14, %c0_15] : memref<64x128xf32, #tpu.memory_space<vmem>>, vector<64x128xf32>
    %21 = arith.maximumf %20, %19 : vector<64x128xf32>
    %c0_16 = arith.constant 0 : index
    %c0_17 = arith.constant 0 : index
    %22 = vector.load %arg8[%c0_16, %c0_17] : memref<64x128xf32, #tpu.memory_space<vmem>>, vector<64x128xf32>
    tpu.vector_store %arg8[%c0_16, %c0_17], %21 {strides = array<i32>} : memref<64x128xf32, #tpu.memory_space<vmem>>, vector<64x128xf32>,
    %c0_i32_18 = arith.constant 0 : i32
    %23 = arith.cmpi eq, %arg1, %c0_i32_18 : i32
    %24 = arith.extui %23 : i1 to i32
    %c0_i32_19 = arith.constant 0 : i32
    %25 = arith.cmpi ne, %24, %c0_i32_19 : i32
    scf.if %25 {
      %cst_20 = arith.constant dense<0xFF800000> : vector<64xf32>
      %26 = vector.multi_reduction <maximumf>, %21, %cst_20 [1] : vector<64x128xf32> to vector<64xf32>
      %27 = vector.shape_cast %26 : vector<64xf32> to vector<64x1xf32>
      %c0_21 = arith.constant 0 : index
      %c0_22 = arith.constant 0 : index
      %c0_23 = arith.constant 0 : index
      %28 = vector.load %arg7[%c0_21, %c0_22, %c0_23] : memref<1x64x1xf32, #tpu.memory_space<vmem>>, vector<1x64x1xf32>
      %29 = vector.shape_cast %28 : vector<1x64x1xf32> to vector<64x1xf32>
      %30 = vector.shape_cast %27 : vector<64x1xf32> to vector<1x64x1xf32>
      tpu.vector_store %arg7[%c0_21, %c0_22, %c0_23], %30 {strides = array<i32>} : memref<1x64x1xf32, #tpu.memory_space<vmem>>, vector<1x64x1xf32>,
    } else {
    }
    return
  }
  func.func @transform_0(%arg0: i32, %arg1: i32) -> (i32, i32, i32) {
    %c0_i32 = arith.constant 0 : i32
    %c0_i32_0 = arith.constant 0 : i32
    return %arg0, %c0_i32, %arg1 : i32, i32, i32
  }
  func.func @transform_1(%arg0: i32, %arg1: i32) -> (i32, i32) {
    %c0_i32 = arith.constant 0 : i32
    %c0_i32_0 = arith.constant 0 : i32
    %c0_i32_1 = arith.constant 0 : i32
    return %c0_i32, %c0_i32_0 : i32, i32
  }
  func.func @transform_2(%arg0: i32, %arg1: i32) -> (i32, i32) {
    %c0_i32 = arith.constant 0 : i32
    %c0_i32_0 = arith.constant 0 : i32
    %c0_i32_1 = arith.constant 0 : i32
    return %c0_i32, %c0_i32_0 : i32, i32
  }
  func.func @transform_3(%arg0: i32, %arg1: i32) -> (i32, i32) {
    %c0_i32 = arith.constant 0 : i32
    %c0_i32_0 = arith.constant 0 : i32
    %c0_i32_1 = arith.constant 0 : i32
    return %c0_i32, %c0_i32_0 : i32, i32
  }
  func.func @transform_4(%arg0: i32, %arg1: i32) -> (i32, i32) {
    %c0_i32 = arith.constant 0 : i32
    %c0_i32_0 = arith.constant 0 : i32
    %c0_i32_1 = arith.constant 0 : i32
    return %c0_i32, %c0_i32_0 : i32, i32
  }
  func.func @transform_5(%arg0: i32, %arg1: i32) -> (i32, i32, i32) {
    %c0_i32 = arith.constant 0 : i32
    %c0_i32_0 = arith.constant 0 : i32
    %c0_i32_1 = arith.constant 0 : i32
    return %arg0, %c0_i32, %c0_i32_0 : i32, i32, i32
  }
}

module attributes {stable_mosaic.version = 11 : i64} {
  func.func @_head_kernel(%arg0: i32, %arg1: i32, %arg2: memref<1x8x128xbf16, #tpu.memory_space<vmem>>, %arg3: memref<64x8xbf16, #tpu.memory_space<vmem>>, %arg4: memref<64x1xf32, #tpu.memory_space<vmem>>, %arg5: memref<1x64x64xbf16, #tpu.memory_space<vmem>>, %arg6: memref<64x1xf32, #tpu.memory_space<vmem>>, %arg7: memref<8x64xbf16, #tpu.memory_space<vmem>>, %arg8: memref<1x1xf32, #tpu.memory_space<vmem>>, %arg9: memref<1x1x128xf32, #tpu.memory_space<vmem>>) attributes {dimension_semantics = [#tpu.dimension_semantics<parallel>, #tpu.dimension_semantics<parallel>], iteration_bounds = array<i64: 4, 1>, scalar_prefetch = 0 : i64, scratch_operands = 0 : i64, tpu.core_type = #tpu.core_type<tc>, window_params = [{transform_indices = @transform_0, window_bounds = array<i64: 1, 8, 128>}, {pipeline_mode = #tpu.pipeline_mode<synchronous>, transform_indices = @transform_1, window_bounds = array<i64: 64, 8>}, {pipeline_mode = #tpu.pipeline_mode<synchronous>, transform_indices = @transform_2, window_bounds = array<i64: 64, 1>}, {transform_indices = @transform_3, window_bounds = array<i64: 1, 64, 64>}, {pipeline_mode = #tpu.pipeline_mode<synchronous>, transform_indices = @transform_4, window_bounds = array<i64: 64, 1>}, {pipeline_mode = #tpu.pipeline_mode<synchronous>, transform_indices = @transform_5, window_bounds = array<i64: 8, 64>}, {pipeline_mode = #tpu.pipeline_mode<synchronous>, transform_indices = @transform_6, window_bounds = array<i64: 1, 1>}, {transform_indices = @transform_7, window_bounds = array<i64: 1, 1, 128>}]} {
    %c0 = arith.constant 0 : index
    %c0_0 = arith.constant 0 : index
    %c0_1 = arith.constant 0 : index
    %0 = vector.load %arg2[%c0, %c0_0, %c0_1] : memref<1x8x128xbf16, #tpu.memory_space<vmem>>, vector<1x8x128xbf16>
    %1 = vector.shape_cast %0 : vector<1x8x128xbf16> to vector<8x128xbf16>
    %c0_2 = arith.constant 0 : index
    %c0_3 = arith.constant 0 : index
    %2 = vector.load %arg3[%c0_2, %c0_3] : memref<64x8xbf16, #tpu.memory_space<vmem>>, vector<64x8xbf16>
    %cst = arith.constant dense<0.000000e+00> : vector<64x128xf32>
    %3 = tpu.matmul %2, %1, %cst {dimension_numbers = #tpu.dot_dimension_numbers<[1], [0], [0], [1], [0, 0, 1, 1], [], []>} : vector<64x8xbf16>, vector<8x128xbf16>, vector<64x128xf32> -> vector<64x128xf32>
    %c0_4 = arith.constant 0 : index
    %c0_5 = arith.constant 0 : index
    %4 = vector.load %arg4[%c0_4, %c0_5] : memref<64x1xf32, #tpu.memory_space<vmem>>, vector<64x1xf32>
    %5 = vector.broadcast %4 : vector<64x1xf32> to vector<64x128xf32>
    %6 = arith.addf %3, %5 : vector<64x128xf32>
    %cst_6 = arith.constant 0.000000e+00 : f32
    %7 = vector.broadcast %cst_6 : f32 to vector<64x128xf32>
    %8 = arith.maximumf %6, %7 : vector<64x128xf32>
    %9 = arith.truncf %8 : vector<64x128xf32> to vector<64x128xbf16>
    %c0_7 = arith.constant 0 : index
    %c0_8 = arith.constant 0 : index
    %c0_9 = arith.constant 0 : index
    %10 = vector.load %arg5[%c0_7, %c0_8, %c0_9] : memref<1x64x64xbf16, #tpu.memory_space<vmem>>, vector<1x64x64xbf16>
    %11 = vector.shape_cast %10 : vector<1x64x64xbf16> to vector<64x64xbf16>
    %cst_10 = arith.constant dense<0.000000e+00> : vector<64x128xf32>
    %12 = tpu.matmul %11, %9, %cst_10 {dimension_numbers = #tpu.dot_dimension_numbers<[1], [0], [0], [1], [0, 0, 1, 1], [], []>} : vector<64x64xbf16>, vector<64x128xbf16>, vector<64x128xf32> -> vector<64x128xf32>
    %c0_11 = arith.constant 0 : index
    %c0_12 = arith.constant 0 : index
    %13 = vector.load %arg6[%c0_11, %c0_12] : memref<64x1xf32, #tpu.memory_space<vmem>>, vector<64x1xf32>
    %14 = vector.broadcast %13 : vector<64x1xf32> to vector<64x128xf32>
    %15 = arith.addf %12, %14 : vector<64x128xf32>
    %cst_13 = arith.constant 0.000000e+00 : f32
    %16 = vector.broadcast %cst_13 : f32 to vector<64x128xf32>
    %17 = arith.maximumf %15, %16 : vector<64x128xf32>
    %18 = arith.truncf %17 : vector<64x128xf32> to vector<64x128xbf16>
    %c0_14 = arith.constant 0 : index
    %c0_15 = arith.constant 0 : index
    %19 = vector.load %arg7[%c0_14, %c0_15] : memref<8x64xbf16, #tpu.memory_space<vmem>>, vector<8x64xbf16>
    %cst_16 = arith.constant dense<0.000000e+00> : vector<8x128xf32>
    %20 = tpu.matmul %19, %18, %cst_16 {dimension_numbers = #tpu.dot_dimension_numbers<[1], [0], [0], [1], [0, 0, 1, 1], [], []>} : vector<8x64xbf16>, vector<64x128xbf16>, vector<8x128xf32> -> vector<8x128xf32>
    %21 = vector.extract_strided_slice %20 {offsets = [0, 0], sizes = [1, 128], strides = [1, 1]} : vector<8x128xf32> to vector<1x128xf32>
    %c0_17 = arith.constant 0 : index
    %c0_18 = arith.constant 0 : index
    %22 = vector.load %arg8[%c0_17, %c0_18] : memref<1x1xf32, #tpu.memory_space<vmem>>, vector<1x1xf32>
    %23 = vector.broadcast %22 : vector<1x1xf32> to vector<1x128xf32>
    %24 = arith.addf %21, %23 : vector<1x128xf32>
    %cst_19 = arith.constant 0.000000e+00 : f32
    %25 = vector.broadcast %cst_19 : f32 to vector<1x128xf32>
    %26 = arith.maximumf %24, %25 : vector<1x128xf32>
    %c0_20 = arith.constant 0 : index
    %c0_21 = arith.constant 0 : index
    %c0_22 = arith.constant 0 : index
    %27 = vector.load %arg9[%c0_20, %c0_21, %c0_22] : memref<1x1x128xf32, #tpu.memory_space<vmem>>, vector<1x1x128xf32>
    %28 = vector.shape_cast %27 : vector<1x1x128xf32> to vector<1x128xf32>
    %29 = vector.shape_cast %26 : vector<1x128xf32> to vector<1x1x128xf32>
    tpu.vector_store %arg9[%c0_20, %c0_21, %c0_22], %29 {strides = array<i32>} : memref<1x1x128xf32, #tpu.memory_space<vmem>>, vector<1x1x128xf32>,
    return
  }
  func.func @transform_0(%arg0: i32, %arg1: i32) -> (i32, i32, i32) {
    %c0_i32 = arith.constant 0 : i32
    %c0_i32_0 = arith.constant 0 : i32
    return %arg0, %c0_i32, %arg1 : i32, i32, i32
  }
  func.func @transform_1(%arg0: i32, %arg1: i32) -> (i32, i32) {
    %c0_i32 = arith.constant 0 : i32
    %c0_i32_0 = arith.constant 0 : i32
    %c0_i32_1 = arith.constant 0 : i32
    return %c0_i32, %c0_i32_0 : i32, i32
  }
  func.func @transform_2(%arg0: i32, %arg1: i32) -> (i32, i32) {
    %c0_i32 = arith.constant 0 : i32
    %c0_i32_0 = arith.constant 0 : i32
    %c0_i32_1 = arith.constant 0 : i32
    return %c0_i32, %c0_i32_0 : i32, i32
  }
  func.func @transform_3(%arg0: i32, %arg1: i32) -> (i32, i32, i32) {
    %c0_i32 = arith.constant 0 : i32
    %c0_i32_0 = arith.constant 0 : i32
    %c0_i32_1 = arith.constant 0 : i32
    return %arg0, %c0_i32, %c0_i32_0 : i32, i32, i32
  }
  func.func @transform_4(%arg0: i32, %arg1: i32) -> (i32, i32) {
    %c0_i32 = arith.constant 0 : i32
    %c0_i32_0 = arith.constant 0 : i32
    %c0_i32_1 = arith.constant 0 : i32
    return %c0_i32, %c0_i32_0 : i32, i32
  }
  func.func @transform_5(%arg0: i32, %arg1: i32) -> (i32, i32) {
    %c0_i32 = arith.constant 0 : i32
    %c0_i32_0 = arith.constant 0 : i32
    %c0_i32_1 = arith.constant 0 : i32
    return %c0_i32, %c0_i32_0 : i32, i32
  }
  func.func @transform_6(%arg0: i32, %arg1: i32) -> (i32, i32) {
    %c0_i32 = arith.constant 0 : i32
    %c0_i32_0 = arith.constant 0 : i32
    %c0_i32_1 = arith.constant 0 : i32
    return %c0_i32, %c0_i32_0 : i32, i32
  }
  func.func @transform_7(%arg0: i32, %arg1: i32) -> (i32, i32, i32) {
    %c0_i32 = arith.constant 0 : i32
    %c0_i32_0 = arith.constant 0 : i32
    return %arg0, %c0_i32, %arg1 : i32, i32, i32
  }
}

</mosaic_0001>

<llo_original>
// kernel: deep_pose_estimator_forward.2
$region0: #{deep_pose_estimator_forward.2}
  #allocation0 [shape = 'u32[]', space=smem, size = 0x4, offset = 0x4, fixed_abs, tag = 'smem constant byte address 0x4 - core index']
  #allocation1 [shape = 'u32[144,128]{1,0:T(1,128)}', space=vmem, size = 0x12000, scoped, tag = 'internal scratch']
  #allocation2 [shape = 'f32[64,128]{1,0:T(8,128)}', space=vmem, size = 0x8000, scoped, tag = 'scratch operand']
  %s0 = inlined_call_operand.vmem [shape: bf16[4,8,128], index: 0, kind: input, shape index: {}]
  %s1 = inlined_call_operand.vmem [shape: bf16[64,8], index: 1, kind: input, shape index: {}]
  %s2 = inlined_call_operand.vmem [shape: f32[64,1], index: 2, kind: input, shape index: {}]
  %s3 = inlined_call_operand.vmem [shape: bf16[64,64], index: 3, kind: input, shape index: {}]
  %s4 = inlined_call_operand.hbm [shape: f32[64,1], index: 4, kind: input, shape index: {}]
  %s5 = inlined_call_operand.vmem [shape: f32[4,64,1], index: 5, kind: output, shape index: {}]
  %s6 = sld [smem:[#allocation0]]
  $region65: #{deep_pose_estimator_forward.2} parent=0
    _
  %s8 = ssub.s32 1, %s6
  %s9 = scalar_select 0, %s8, %s6
  $region1: #{deep_pose_estimator_forward.2} parent=0
    #allocation3 [shape = 'u8[32768]{0}', space=vmem, size = 0x8000, scoped, tag = 'input window, operand 4, single buffered']
    #allocation4 [shape = 's32[2]{0}', space=sflag, size = 0x8, scoped, tag = 'scoped memory for deep_pose_estimator_forward.2']
    %10 = vsyncpa [#allocation4], 0
    loop: start=0, step=1, limit=6
    $region2: #{deep_pose_estimator_forward.2} parent=1 // loop_pre_header
      _
    $region3: #{deep_pose_estimator_forward.2} parent=1 // loop_header
      %s12 = sphi 0, %s16
      %p13 = scmp.ge.s32.totalorder %s12, 6
      %s19 = sphi 0, %s31
      %s20 = sphi 0, %s27
      %s21 = sphi 0, %s19
      %s22 = sphi 0, %s20
      %s23 = sphi 0, %s21
      %s24 = sphi 0, %s22
      %s36 = sphi 0, %s38
      %s39 = sphi 0, %s36
      %s40 = sphi 0, %s39
      %s56 = sphi 0, %s40
      %s60 = sphi 0, %s60
      %s62 = sphi 0, %s60
      %s63 = sphi 0, %s62
      %s77 = sphi 0, %s63
      %s81 = sphi 0, %s81
      %s83 = sphi 0, %s81
      %s84 = sphi 0, %s83
      %s98 = sphi 0, %s84
      %s102 = sphi 0, %s102
      %s104 = sphi 0, %s102
      %s105 = sphi 0, %s104
      %s119 = sphi 0, %s105
      %s123 = sphi 0, %s123
      %s125 = sphi 0, %s123
      %s126 = sphi 0, %s125
      %s140 = sphi 0, %s126
      %s146 = sphi 0, %s148
      %s149 = sphi 0, %s146
      %s150 = sphi 0, %s149
      %s166 = sphi 0, %s150
    $region4: #{deep_pose_estimator_forward.2} parent=1 // loop_header_branch
      %15 = sbr.rel (%p13) target = $region8
    $region5: #{deep_pose_estimator_forward.2} parent=1 // loop_body
      %s17 = ssub.s32 %s12, 1
      %s18 = ssub.s32 %s12, 2
      %s25 = sadd.s32 1, %s20
      %p26 = scmp.ge.s32.totalorder %s25, 1
      %s27 = scalar_select %p26, 0, %s25
      %s28 = sadd.s32 1, %s19
      %s29 = scalar_select %p26, %s28, %s19
      %p30 = scmp.ge.s32.totalorder %s29, 4
      %s31 = scalar_select %p30, 0, %s29
      %s32 = ssub.s32 %s19, %s31
      %s33 = ssub.s32 %s20, %s27
      %s34 = sor.u32 %s32, %s33
      %p35 = scmp.eq.s32.totalorder %s34, 0
      %s37 = sadd.s32 %s36, 1
      %s38 = scalar_select %p35, %s36, %s37
      %p41 = pneg %p35
      %p42 = scmp.eq.s32.totalorder %s12, 3
      %p43 = por %p41, %p42
      %p44 = scmp.ne.s32.totalorder %s36, %s39
      %p45 = scmp.eq.s32.totalorder %s12, 0
      %p46 = por %p44, %p45
      %p47 = scmp.ne.s32.totalorder %s36, %s39
      %p48 = scmp.eq.s32.totalorder %s17, 3
      %p49 = por %p47, %p48
      %p50 = scmp.ne.s32.totalorder %s39, %s40
      %p51 = scmp.eq.s32.totalorder %s17, 0
      %p52 = por %p50, %p51
      %p53 = scmp.ne.s32.totalorder %s39, %s40
      %p54 = scmp.eq.s32.totalorder %s18, 3
      %p55 = por %p53, %p54
      %p57 = scmp.ne.s32.totalorder %s40, %s56
      %p58 = scmp.eq.s32.totalorder %s18, 0
      %p59 = por %p57, %p58
      %s61 = sadd.s32 %s60, 1
      %p64 = scmp.eq.s32.totalorder %s12, 3
      %p65 = scmp.ne.s32.totalorder %s60, %s62
      %p66 = scmp.eq.s32.totalorder %s12, 0
      %p67 = por %p65, %p66
      %p68 = scmp.ne.s32.totalorder %s60, %s62
      %p69 = scmp.eq.s32.totalorder %s17, 3
      %p70 = por %p68, %p69
      %p71 = scmp.ne.s32.totalorder %s62, %s63
      %p72 = scmp.eq.s32.totalorder %s17, 0
      %p73 = por %p71, %p72
      %p74 = scmp.ne.s32.totalorder %s62, %s63
      %p75 = scmp.eq.s32.totalorder %s18, 3
      %p76 = por %p74, %p75
      %p78 = scmp.ne.s32.totalorder %s63, %s77
      %p79 = scmp.eq.s32.totalorder %s18, 0
      %p80 = por %p78, %p79
      %s82 = sadd.s32 %s81, 1
      %p85 = scmp.eq.s32.totalorder %s12, 3
      %p86 = scmp.ne.s32.totalorder %s81, %s83
      %p87 = scmp.eq.s32.totalorder %s12, 0
      %p88 = por %p86, %p87
      %p89 = scmp.ne.s32.totalorder %s81, %s83
      %p90 = scmp.eq.s32.totalorder %s17, 3
      %p91 = por %p89, %p90
      %p92 = scmp.ne.s32.totalorder %s83, %s84
      %p93 = scmp.eq.s32.totalorder %s17, 0
      %p94 = por %p92, %p93
      %p95 = scmp.ne.s32.totalorder %s83, %s84
      %p96 = scmp.eq.s32.totalorder %s18, 3
      %p97 = por %p95, %p96
      %p99 = scmp.ne.s32.totalorder %s84, %s98
      %p100 = scmp.eq.s32.totalorder %s18, 0
      %p101 = por %p99, %p100
      %s103 = sadd.s32 %s102, 1
      %p106 = scmp.eq.s32.totalorder %s12, 3
      %p107 = scmp.ne.s32.totalorder %s102, %s104
      %p108 = scmp.eq.s32.totalorder %s12, 0
      %p109 = por %p107, %p108
      %p110 = scmp.ne.s32.totalorder %s102, %s104
      %p111 = scmp.eq.s32.totalorder %s17, 3
      %p112 = por %p110, %p111
      %p113 = scmp.ne.s32.totalorder %s104, %s105
      %p114 = scmp.eq.s32.totalorder %s17, 0
      %p115 = por %p113, %p114
      %p116 = scmp.ne.s32.totalorder %s104, %s105
      %p117 = scmp.eq.s32.totalorder %s18, 3
      %p118 = por %p116, %p117
      %p120 = scmp.ne.s32.totalorder %s105, %s119
      %p121 = scmp.eq.s32.totalorder %s18, 0
      %p122 = por %p120, %p121
      %s124 = sadd.s32 %s123, 1
      %p127 = scmp.eq.s32.totalorder %s12, 3
      %p128 = scmp.ne.s32.totalorder %s123, %s125
      %p129 = scmp.eq.s32.totalorder %s12, 0
      %p130 = por %p128, %p129
      %p131 = scmp.ne.s32.totalorder %s123, %s125
      %p132 = scmp.eq.s32.totalorder %s17, 3
      %p133 = por %p131, %p132
      %p134 = scmp.ne.s32.totalorder %s125, %s126
      %p135 = scmp.eq.s32.totalorder %s17, 0
      %p136 = por %p134, %p135
      %p137 = scmp.ne.s32.totalorder %s125, %s126
      %p138 = scmp.eq.s32.totalorder %s18, 3
      %p139 = por %p137, %p138
      %p141 = scmp.ne.s32.totalorder %s126, %s140
      %p142 = scmp.eq.s32.totalorder %s18, 0
      %p143 = por %p141, %p142
      %s144 = ssub.s32 %s19, %s31
      %p145 = scmp.eq.s32.totalorder %s144, 0
      %s147 = sadd.s32 %s146, 1
      %s148 = scalar_select %p145, %s146, %s147
      %p151 = pneg %p145
      %p152 = scmp.eq.s32.totalorder %s12, 3
      %p153 = por %p151, %p152
      %p154 = scmp.ne.s32.totalorder %s146, %s149
      %p155 = scmp.eq.s32.totalorder %s12, 0
      %p156 = por %p154, %p155
      %p157 = scmp.ne.s32.totalorder %s146, %s149
      %p158 = scmp.eq.s32.totalorder %s17, 3
      %p159 = por %p157, %p158
      %p160 = scmp.ne.s32.totalorder %s149, %s150
      %p161 = scmp.eq.s32.totalorder %s17, 0
      %p162 = por %p160, %p161
      %p163 = scmp.ne.s32.totalorder %s149, %s150
      %p164 = scmp.eq.s32.totalorder %s18, 3
      %p165 = por %p163, %p164
      %p167 = scmp.ne.s32.totalorder %s150, %s166
      %p168 = scmp.eq.s32.totalorder %s18, 0
      %p169 = por %p167, %p168
      %p170 = scmp.le.s32.totalorder 1, %s12
      %p171 = scmp.lt.s32.totalorder %s12, 5
      %p172 = pnand %p170, %p171
      %p173 = pneg %p172
      // Predicated region
      $region9: #{deep_pose_estimator_forward.2} parent=5 // pred_check
        _
      $region10: #{deep_pose_estimator_forward.2} parent=5 // pred_check_branch
        %175 = sbr.rel (%p172) target = $region12
      $region11: #{deep_pose_estimator_forward.2} parent=5 // pred_region
        %s176 = ssub.s32 %s12, 1
        // Predicated region
        $region13: #{deep_pose_estimator_forward.2} parent=11 // pred_check
          %p177 = pneg %p73
        $region14: #{deep_pose_estimator_forward.2} parent=11 // pred_check_branch
          %179 = sbr.rel (%p177) target = $region16
        $region15: #{deep_pose_estimator_forward.2} parent=11 // pred_region
          _
        $region16: #{deep_pose_estimator_forward.2} parent=11 // pred_fallthru
          _
        // Predicated region
        $region17: #{deep_pose_estimator_forward.2} parent=11 // pred_check
          %p180 = pneg %p94
        $region18: #{deep_pose_estimator_forward.2} parent=11 // pred_check_branch
          %182 = sbr.rel (%p180) target = $region20
        $region19: #{deep_pose_estimator_forward.2} parent=11 // pred_region
          _
        $region20: #{deep_pose_estimator_forward.2} parent=11 // pred_fallthru
          _
        // Predicated region
        $region21: #{deep_pose_estimator_forward.2} parent=11 // pred_check
          %p183 = pneg %p115
        $region22: #{deep_pose_estimator_forward.2} parent=11 // pred_check_branch
          %185 = sbr.rel (%p183) target = $region24
        $region23: #{deep_pose_estimator_forward.2} parent=11 // pred_region
          _
        $region24: #{deep_pose_estimator_forward.2} parent=11 // pred_fallthru
          _
        // Predicated region
        $region25: #{deep_pose_estimator_forward.2} parent=11 // pred_check
          %p186 = pneg %p136
        $region26: #{deep_pose_estimator_forward.2} parent=11 // pred_check_branch
          %188 = sbr.rel (%p186) target = $region28
        $region27: #{deep_pose_estimator_forward.2} parent=11 // pred_region
          %s190 = ssub.s32 1024, 1024
          %191 = vsyncadd [#allocation4], %s190
          %s192 = sshll.u32 [#allocation3], 4
          %s193 = int_to_ptr.vmem [resolvable:$true] %s192
          %198 = dma.hbm_to_vmem [thread:$0]  %s4, 1024, %s193, [#allocation4], 128, 128, 8
        $region28: #{deep_pose_estimator_forward.2} parent=11 // pred_fallthru
          _
      $region12: #{deep_pose_estimator_forward.2} parent=5 // pred_fallthru
        _
      %p199 = scmp.lt.s32.totalorder %s12, 4
      // Predicated region
      $region29: #{deep_pose_estimator_forward.2} parent=5 // pred_check
        %p200 = pneg %p199
      $region30: #{deep_pose_estimator_forward.2} parent=5 // pred_check_branch
        %202 = sbr.rel (%p200) target = $region32
      $region31: #{deep_pose_estimator_forward.2} parent=5 // pred_region
        // Predicated region
        $region33: #{deep_pose_estimator_forward.2} parent=31 // pred_check
          %p203 = pneg %p46
        $region34: #{deep_pose_estimator_forward.2} parent=31 // pred_check_branch
          %205 = sbr.rel (%p203) target = $region36
        $region35: #{deep_pose_estimator_forward.2} parent=31 // pred_region
          %p206 = scmp.lt.s32.totalorder %s19, 3
          %s207 = scalar_select %p206, %s19, 3
          %p208 = scmp.lt.s32.totalorder %s20, 0
          %s209 = scalar_select %p208, %s20, 0
          %s210 = sadd.s32 %s209, %s207
          %s211 = smul.addr %s210, 4
          %s212 = scalar_lea.vmem %s0, %s211
        $region36: #{deep_pose_estimator_forward.2} parent=31 // pred_fallthru
          _
      $region32: #{deep_pose_estimator_forward.2} parent=5 // pred_fallthru
        _
      %p213 = scmp.le.s32.totalorder 1, %s12
      %p214 = scmp.lt.s32.totalorder %s12, 5
      %p215 = pnand %p213, %p214
      %p216 = pneg %p215
      // Predicated region
      $region37: #{deep_pose_estimator_forward.2} parent=5 // pred_check
        _
      $region38: #{deep_pose_estimator_forward.2} parent=5 // pred_check_branch
        %218 = sbr.rel (%p215) target = $region40
      $region39: #{deep_pose_estimator_forward.2} parent=5 // pred_region
        %s219 = ssub.s32 %s12, 1
        // Predicated region
        $region41: #{deep_pose_estimator_forward.2} parent=39 // pred_check
          %p220 = pneg %p136
        $region42: #{deep_pose_estimator_forward.2} parent=39 // pred_check_branch
          %222 = sbr.rel (%p220) target = $region44
        $region43: #{deep_pose_estimator_forward.2} parent=39 // pred_region
          %223 = dma.done [#allocation4], 1024
        $region44: #{deep_pose_estimator_forward.2} parent=39 // pred_fallthru
          _
        %p224 = scmp.lt.s32.totalorder %s21, 3
        %s225 = scalar_select %p224, %s21, 3
        %p226 = scmp.lt.s32.totalorder %s22, 0
        %s227 = scalar_select %p226, %s22, 0
        %s228 = sadd.s32 %s227, %s225
        %s229 = smul.addr %s228, 4
        %s230 = scalar_lea.vmem %s0, %s229
        %p231 = pneg %p52
        %p232 = pneg %p49
        %p233 = pneg %p73
        %p234 = pneg %p70
        %p235 = pneg %p94
        %p236 = pneg %p91
        %p237 = pneg %p115
        %p238 = pneg %p112
        %p239 = pneg %p136
        %p240 = pneg %p133
        %p241 = pneg %p162
        %p242 = pneg %p159
        %p243 = scmp.lt.s32.totalorder %s21, 3
        %s244 = scalar_select %p243, %s21, 3
        %s245 = smul.addr %s244, 8
        %s246 = smul.addr %s245, 8
        %s247 = scalar_lea.vmem %s5, %s246
        %p248 = scmp.lt.s32.totalorder %s21, 3
        %s249 = scalar_select %p248, %s21, 3
        %p250 = scmp.lt.s32.totalorder %s22, 0
        %s251 = scalar_select %p250, %s22, 0
        %s252 = sadd.s32 %s251, %s249
        %s253 = smul.addr %s252, 4
        %s254 = scalar_lea.vmem %s0, %s253
        %p255 = scmp.lt.s32.totalorder %s21, 3
        %s256 = scalar_select %p255, %s21, 3
        %s257 = smul.addr %s256, 8
        %s258 = smul.addr %s257, 8
        %s259 = scalar_lea.vmem %s5, %s258
        %p261 = scmp.eq.s32.totalorder %s22, 0
        // Predicated region
        $region45: #{deep_pose_estimator_forward.2} parent=39 // pred_check
          %p262 = pneg %p261
        $region46: #{deep_pose_estimator_forward.2} parent=39 // pred_check_branch
          %264 = sbr.rel (%p262) target = $region48
        $region47: #{deep_pose_estimator_forward.2} parent=39 // pred_region
          %265 = vst [vmem:[#allocation2] sm:$0xff] 0.0
          %266 = vst [vmem:[#allocation2 + $0x8] sm:$0xff] 0.0
          %267 = vst [vmem:[#allocation2 + $0x10] sm:$0xff] 0.0
          %268 = vst [vmem:[#allocation2 + $0x18] sm:$0xff] 0.0
          %269 = vst [vmem:[#allocation2 + $0x20] sm:$0xff] 0.0
          %270 = vst [vmem:[#allocation2 + $0x28] sm:$0xff] 0.0
          %271 = vst [vmem:[#allocation2 + $0x30] sm:$0xff] 0.0
          %272 = vst [vmem:[#allocation2 + $0x38] sm:$0xff] 0.0
        $region48: #{deep_pose_estimator_forward.2} parent=39 // pred_fallthru
          _
        %v273 = vld [vmem:[%s254] sm:$0xf]
        %v274 = vld [vmem:[%s1] sm:$0xf]
        %v275 = vld [vmem:[%s1 + $0x4] sm:$0xf]
        %v276 = vld [vmem:[%s1 + $0x8] sm:$0xf]
        %v277 = vld [vmem:[%s1 + $0xc] sm:$0xf]
        %v278 = vld [vmem:[%s1 + $0x10] sm:$0xf]
        %v279 = vld [vmem:[%s1 + $0x14] sm:$0xf]
        %v280 = vld [vmem:[%s1 + $0x18] sm:$0xf]
        %v281 = vld [vmem:[%s1 + $0x1c] sm:$0xf]
        %v282 = vld [vmem:[%s2] sm:$0xff]
        %v283 = vld [vmem:[%s2 + $0x8] sm:$0xff]
        %v284 = vld [vmem:[%s2 + $0x10] sm:$0xff]
        %v285 = vld [vmem:[%s2 + $0x18] sm:$0xff]
        %v286 = vld [vmem:[%s2 + $0x20] sm:$0xff]
        %v287 = vld [vmem:[%s2 + $0x28] sm:$0xff]
        %v288 = vld [vmem:[%s2 + $0x30] sm:$0xff]
        %v289 = vld [vmem:[%s2 + $0x38] sm:$0xff]
        %291 = vset.pattern.permute.xlu0 0
        %292 = vperm.xlu0 %291, %v282
        %v293 = vpop.permute.xlu0 %292
        %296 = vset.pattern.permute.xlu0 0
        %297 = vperm.xlu0 %296, %v283
        %v298 = vpop.permute.xlu0 %297
        %301 = vset.pattern.permute.xlu0 0
        %302 = vperm.xlu0 %301, %v284
        %v303 = vpop.permute.xlu0 %302
        %306 = vset.pattern.permute.xlu0 0
        %307 = vperm.xlu0 %306, %v285
        %v308 = vpop.permute.xlu0 %307
        %311 = vset.pattern.permute.xlu0 0
        %312 = vperm.xlu0 %311, %v286
        %v313 = vpop.permute.xlu0 %312
        %316 = vset.pattern.permute.xlu0 0
        %317 = vperm.xlu0 %316, %v287
        %v318 = vpop.permute.xlu0 %317
        %321 = vset.pattern.permute.xlu0 0
        %322 = vperm.xlu0 %321, %v288
        %v323 = vpop.permute.xlu0 %322
        %326 = vset.pattern.permute.xlu0 0
        %327 = vperm.xlu0 %326, %v289
        %v328 = vpop.permute.xlu0 %327
        %v338 = vunpack.c.l.b16 %v274
        %v339 = vunpack.c.l.b16 %v275
        %v340 = vunpack.c.l.b16 %v276
        %v341 = vunpack.c.l.b16 %v277
        %v342 = vunpack.c.l.b16 %v278
        %v343 = vunpack.c.l.b16 %v279
        %v344 = vunpack.c.l.b16 %v280
        %v345 = vunpack.c.l.b16 %v281
        %v346 = vpack.c.b16 %v339, %v338
        %v347 = vpack.c.b16 %v341, %v340
        %v348 = vpack.c.b16 %v343, %v342
        %v349 = vpack.c.b16 %v345, %v344
        %vm350 = vcmask 64512
        %v352 = vsel %vm350, %v346, 0
        %v355 = vsel %vm350, %v347, 0
        %v358 = vsel %vm350, %v348, 0
        %v361 = vsel %vm350, %v349, 0
        %vm363 = vcmask 1043456
        %v365 = vsel %vm363, %v273, 0
        %367 = vmatprep.subr.bf16.mxu0 0
        %368 = vmatpush1.bf16.msra.mxu0 %v365
        %369 = vmatprep.subr.bf16.mxu0 0
        %370 = vmatpush1.bf16.msra.mxu0 0
        %371 = vmatprep.subr.bf16.mxu0 0
        %372 = vmatpush1.bf16.msra.mxu0 0
        %373 = vmatprep.subr.bf16.mxu0 0
        %374 = vmatpush1.bf16.msra.mxu0 0
        %375 = vmatprep.subr.bf16.mxu0 0
        %376 = vmatpush1.bf16.msra.mxu0 0
        %377 = vmatprep.subr.bf16.mxu0 0
        %378 = vmatpush1.bf16.msra.mxu0 0
        %379 = vmatprep.subr.bf16.mxu0 0
        %380 = vmatpush1.bf16.msra.mxu0 0
        %381 = vmatprep.subr.bf16.mxu0 0
        %382 = vmatpush1.bf16.msra.mxu0 0
        %383 = vmatprep.subr.bf16.mxu0 0
        %384 = vmatpush1.bf16.msra.mxu0 0
        %385 = vmatprep.subr.bf16.mxu0 0
        %386 = vmatpush1.bf16.msra.mxu0 0
        %387 = vmatprep.subr.bf16.mxu0 0
        %388 = vmatpush1.bf16.msra.mxu0 0
        %389 = vmatprep.subr.bf16.mxu0 0
        %390 = vmatpush1.bf16.msra.mxu0 0
        %391 = vmatprep.subr.bf16.mxu0 0
        %392 = vmatpush1.bf16.msra.mxu0 0
        %393 = vmatprep.subr.bf16.mxu0 0
        %394 = vmatpush1.bf16.msra.mxu0 0
        %395 = vmatprep.subr.bf16.mxu0 0
        %396 = vmatpush1.bf16.msra.mxu0 0
        %397 = vmatprep.subr.bf16.mxu0 0
        %398 = vmatpush1.bf16.msra.mxu0 0
        %399 = vmatprep.mubr.bf16.mxu0 0
        %400 = vmatmul.mubr.bf16.gmra.mrb[0].mxu0 %v352
        %v401 = vpop.f32.mrb[0].mxu0
        %v402 = vadd.f32 %v293, %v401
        %v403 = vpop.f32.mrb[0].mxu0
        %v404 = vpop.f32.mrb[0].mxu0
        %v405 = vadd.f32 %v298, %v404
        %v406 = vpop.f32.mrb[0].mxu0
        %407 = vmatprep.mubr.bf16.mxu0 0
        %408 = vmatmul.mubr.bf16.gmra.mrb[0].mxu0 %v355
        %v409 = vpop.f32.mrb[0].mxu0
        %v410 = vadd.f32 %v303, %v409
        %v411 = vpop.f32.mrb[0].mxu0
        %v412 = vpop.f32.mrb[0].mxu0
        %v413 = vadd.f32 %v308, %v412
        %v414 = vpop.f32.mrb[0].mxu0
        %415 = vmatprep.mubr.bf16.mxu0 0
        %416 = vmatmul.mubr.bf16.gmra.mrb[0].mxu0 %v358
        %v417 = vpop.f32.mrb[0].mxu0
        %v418 = vadd.f32 %v313, %v417
        %v419 = vpop.f32.mrb[0].mxu0
        %v420 = vpop.f32.mrb[0].mxu0
        %v421 = vadd.f32 %v318, %v420
        %v422 = vpop.f32.mrb[0].mxu0
        %423 = vmatprep.mubr.bf16.mxu0 0
        %424 = vmatmul.mubr.bf16.gmra.mrb[0].mxu0 %v361
        %v425 = vpop.f32.mrb[0].mxu0
        %v426 = vadd.f32 %v323, %v425
        %v427 = vpop.f32.mrb[0].mxu0
        %v428 = vpop.f32.mrb[0].mxu0
        %v429 = vadd.f32 %v328, %v428
        %v430 = vpop.f32.mrb[0].mxu0
        %431 = vdwg.mxu0
        %v432 = vmax.f32 %v402, 0.0
        %v433 = vmax.f32 %v405, 0.0
        %v434 = vmax.f32 %v410, 0.0
        %v435 = vmax.f32 %v413, 0.0
        %v436 = vmax.f32 %v418, 0.0
        %v437 = vmax.f32 %v421, 0.0
        %v438 = vmax.f32 %v426, 0.0
        %v439 = vmax.f32 %v429, 0.0
        %v440 = vpack.c.bf16 %v433, %v432
        %v441 = vpack.c.bf16 %v435, %v434
        %v442 = vpack.c.bf16 %v437, %v436
        %v443 = vpack.c.bf16 %v439, %v438
        %v444 = vld [vmem:[%s3] sm:$0xf]
        %v445 = vld [vmem:[%s3 + $0x4] sm:$0xf]
        %v446 = vld [vmem:[%s3 + $0x8] sm:$0xf]
        %v447 = vld [vmem:[%s3 + $0xc] sm:$0xf]
        %v448 = vld [vmem:[%s3 + $0x10] sm:$0xf]
        %v449 = vld [vmem:[%s3 + $0x14] sm:$0xf]
        %v450 = vld [vmem:[%s3 + $0x18] sm:$0xf]
        %v451 = vld [vmem:[%s3 + $0x1c] sm:$0xf]
        %v452 = vld [vmem:[#allocation3] sm:$0xff]
        %v453 = vld [vmem:[#allocation3 + $0x8] sm:$0xff]
        %v454 = vld [vmem:[#allocation3 + $0x10] sm:$0xff]
        %v455 = vld [vmem:[#allocation3 + $0x18] sm:$0xff]
        %v456 = vld [vmem:[#allocation3 + $0x20] sm:$0xff]
        %v457 = vld [vmem:[#allocation3 + $0x28] sm:$0xff]
        %v458 = vld [vmem:[#allocation3 + $0x30] sm:$0xff]
        %v459 = vld [vmem:[#allocation3 + $0x38] sm:$0xff]
        %461 = vset.pattern.permute.xlu0 0
        %462 = vperm.xlu0 %461, %v452
        %v463 = vpop.permute.xlu0 %462
        %466 = vset.pattern.permute.xlu0 0
        %467 = vperm.xlu0 %466, %v453
        %v468 = vpop.permute.xlu0 %467
        %471 = vset.pattern.permute.xlu0 0
        %472 = vperm.xlu0 %471, %v454
        %v473 = vpop.permute.xlu0 %472
        %476 = vset.pattern.permute.xlu0 0
        %477 = vperm.xlu0 %476, %v455
        %v478 = vpop.permute.xlu0 %477
        %481 = vset.pattern.permute.xlu0 0
        %482 = vperm.xlu0 %481, %v456
        %v483 = vpop.permute.xlu0 %482
        %486 = vset.pattern.permute.xlu0 0
        %487 = vperm.xlu0 %486, %v457
        %v488 = vpop.permute.xlu0 %487
        %491 = vset.pattern.permute.xlu0 0
        %492 = vperm.xlu0 %491, %v458
        %v493 = vpop.permute.xlu0 %492
        %496 = vset.pattern.permute.xlu0 0
        %497 = vperm.xlu0 %496, %v459
        %v498 = vpop.permute.xlu0 %497
        %v508 = vunpack.c.l.b16 %v444
        %v509 = vunpack.c.l.b16 %v445
        %v510 = vunpack.c.l.b16 %v446
        %v511 = vunpack.c.l.b16 %v447
        %v512 = vunpack.c.l.b16 %v448
        %v513 = vunpack.c.l.b16 %v449
        %v514 = vunpack.c.l.b16 %v450
        %v515 = vunpack.c.l.b16 %v451
        %v516 = vpack.c.b16 %v509, %v508
        %v517 = vpack.c.b16 %v511, %v510
        %v518 = vpack.c.b16 %v513, %v512
        %v519 = vpack.c.b16 %v515, %v514
        %vm520 = vcmask 523264
        %v522 = vsel %vm520, %v516, 0
        %v525 = vsel %vm520, %v517, 0
        %v528 = vsel %vm520, %v518, 0
        %v531 = vsel %vm520, %v519, 0
        %533 = vmatprep.subr.bf16.mxu0 0
        %534 = vmatpush1.bf16.msra.mxu0 %v440
        %535 = vmatprep.subr.bf16.mxu0 0
        %536 = vmatpush1.bf16.msra.mxu0 %v441
        %537 = vmatprep.subr.bf16.mxu0 0
        %538 = vmatpush1.bf16.msra.mxu0 %v442
        %539 = vmatprep.subr.bf16.mxu0 0
        %540 = vmatpush1.bf16.msra.mxu0 %v443
        %541 = vmatprep.subr.bf16.mxu0 0
        %542 = vmatpush1.bf16.msra.mxu0 0
        %543 = vmatprep.subr.bf16.mxu0 0
        %544 = vmatpush1.bf16.msra.mxu0 0
        %545 = vmatprep.subr.bf16.mxu0 0
        %546 = vmatpush1.bf16.msra.mxu0 0
        %547 = vmatprep.subr.bf16.mxu0 0
        %548 = vmatpush1.bf16.msra.mxu0 0
        %549 = vmatprep.subr.bf16.mxu0 0
        %550 = vmatpush1.bf16.msra.mxu0 0
        %551 = vmatprep.subr.bf16.mxu0 0
        %552 = vmatpush1.bf16.msra.mxu0 0
        %553 = vmatprep.subr.bf16.mxu0 0
        %554 = vmatpush1.bf16.msra.mxu0 0
        %555 = vmatprep.subr.bf16.mxu0 0
        %556 = vmatpush1.bf16.msra.mxu0 0
        %557 = vmatprep.subr.bf16.mxu0 0
        %558 = vmatpush1.bf16.msra.mxu0 0
        %559 = vmatprep.subr.bf16.mxu0 0
        %560 = vmatpush1.bf16.msra.mxu0 0
        %561 = vmatprep.subr.bf16.mxu0 0
        %562 = vmatpush1.bf16.msra.mxu0 0
        %563 = vmatprep.subr.bf16.mxu0 0
        %564 = vmatpush1.bf16.msra.mxu0 0
        %565 = vmatprep.mubr.bf16.mxu0 0
        %566 = vmatmul.mubr.bf16.gmra.mrb[0].mxu0 %v522
        %v567 = vpop.f32.mrb[0].mxu0
        %v568 = vadd.f32 %v463, %v567
        %v569 = vpop.f32.mrb[0].mxu0
        %v570 = vpop.f32.mrb[0].mxu0
        %v571 = vadd.f32 %v468, %v570
        %v572 = vpop.f32.mrb[0].mxu0
        %573 = vmatprep.mubr.bf16.mxu0 0
        %574 = vmatmul.mubr.bf16.gmra.mrb[0].mxu0 %v525
        %v575 = vpop.f32.mrb[0].mxu0
        %v576 = vadd.f32 %v473, %v575
        %v577 = vpop.f32.mrb[0].mxu0
        %v578 = vpop.f32.mrb[0].mxu0
        %v579 = vadd.f32 %v478, %v578
        %v580 = vpop.f32.mrb[0].mxu0
        %581 = vmatprep.mubr.bf16.mxu0 0
        %582 = vmatmul.mubr.bf16.gmra.mrb[0].mxu0 %v528
        %v583 = vpop.f32.mrb[0].mxu0
        %v584 = vadd.f32 %v483, %v583
        %v585 = vpop.f32.mrb[0].mxu0
        %v586 = vpop.f32.mrb[0].mxu0
        %v587 = vadd.f32 %v488, %v586
        %v588 = vpop.f32.mrb[0].mxu0
        %589 = vmatprep.mubr.bf16.mxu0 0
        %590 = vmatmul.mubr.bf16.gmra.mrb[0].mxu0 %v531
        %v591 = vpop.f32.mrb[0].mxu0
        %v592 = vadd.f32 %v493, %v591
        %v593 = vpop.f32.mrb[0].mxu0
        %v594 = vpop.f32.mrb[0].mxu0
        %v595 = vadd.f32 %v498, %v594
        %v596 = vpop.f32.mrb[0].mxu0
        %597 = vdwg.mxu0
        %v598 = vmax.f32 %v568, 0.0
        %v599 = vmax.f32 %v571, 0.0
        %v600 = vmax.f32 %v576, 0.0
        %v601 = vmax.f32 %v579, 0.0
        %v602 = vmax.f32 %v584, 0.0
        %v603 = vmax.f32 %v587, 0.0
        %v604 = vmax.f32 %v592, 0.0
        %v605 = vmax.f32 %v595, 0.0
        %v606 = vld [vmem:[#allocation2] sm:$0xff]
        %v607 = vld [vmem:[#allocation2 + $0x8] sm:$0xff]
        %v608 = vld [vmem:[#allocation2 + $0x10] sm:$0xff]
        %v609 = vld [vmem:[#allocation2 + $0x18] sm:$0xff]
        %v610 = vld [vmem:[#allocation2 + $0x20] sm:$0xff]
        %v611 = vld [vmem:[#allocation2 + $0x28] sm:$0xff]
        %v612 = vld [vmem:[#allocation2 + $0x30] sm:$0xff]
        %v613 = vld [vmem:[#allocation2 + $0x38] sm:$0xff]
        %v614 = vmax.f32 %v606, %v598
        %v615 = vmax.f32 %v607, %v599
        %v616 = vmax.f32 %v608, %v600
        %v617 = vmax.f32 %v609, %v601
        %v618 = vmax.f32 %v610, %v602
        %v619 = vmax.f32 %v611, %v603
        %v620 = vmax.f32 %v612, %v604
        %v621 = vmax.f32 %v613, %v605
        %622 = vst [vmem:[#allocation2] sm:$0xff] %v614
        %623 = vst [vmem:[#allocation2 + $0x8] sm:$0xff] %v615
        %624 = vst [vmem:[#allocation2 + $0x10] sm:$0xff] %v616
        %625 = vst [vmem:[#allocation2 + $0x18] sm:$0xff] %v617
        %626 = vst [vmem:[#allocation2 + $0x20] sm:$0xff] %v618
        %627 = vst [vmem:[#allocation2 + $0x28] sm:$0xff] %v619
        %628 = vst [vmem:[#allocation2 + $0x30] sm:$0xff] %v620
        %629 = vst [vmem:[#allocation2 + $0x38] sm:$0xff] %v621
        // Predicated region
        $region49: #{deep_pose_estimator_forward.2} parent=39 // pred_check
          %p630 = pneg %p261
        $region50: #{deep_pose_estimator_forward.2} parent=39 // pred_check_branch
          %632 = sbr.rel (%p630) target = $region52
        $region51: #{deep_pose_estimator_forward.2} parent=39 // pred_region
          %633 = vmax.xlane.f32.xlu0 %v614
          %v634 = vpop.xlane.xlu0 %633
          %635 = vmax.xlane.f32.xlu0 %v615
          %v636 = vpop.xlane.xlu0 %635
          %637 = vmax.xlane.f32.xlu0 %v616
          %v638 = vpop.xlane.xlu0 %637
          %639 = vmax.xlane.f32.xlu0 %v617
          %v640 = vpop.xlane.xlu0 %639
          %641 = vmax.xlane.f32.xlu0 %v618
          %v642 = vpop.xlane.xlu0 %641
          %643 = vmax.xlane.f32.xlu0 %v619
          %v644 = vpop.xlane.xlu0 %643
          %645 = vmax.xlane.f32.xlu0 %v620
          %v646 = vpop.xlane.xlu0 %645
          %647 = vmax.xlane.f32.xlu0 %v621
          %v648 = vpop.xlane.xlu0 %647
          %vm649 = vcmask 7168
          %650 = vst.msk [vmem:[%s259] sm:$0xff] %vm649, %v634
          %651 = vst.msk [vmem:[%s259 + $0x8] sm:$0xff] %vm649, %v636
          %652 = vst.msk [vmem:[%s259 + $0x10] sm:$0xff] %vm649, %v638
          %653 = vst.msk [vmem:[%s259 + $0x18] sm:$0xff] %vm649, %v640
          %654 = vst.msk [vmem:[%s259 + $0x20] sm:$0xff] %vm649, %v642
          %655 = vst.msk [vmem:[%s259 + $0x28] sm:$0xff] %vm649, %v644
          %656 = vst.msk [vmem:[%s259 + $0x30] sm:$0xff] %vm649, %v646
          %657 = vst.msk [vmem:[%s259 + $0x38] sm:$0xff] %vm649, %v648
        $region52: #{deep_pose_estimator_forward.2} parent=39 // pred_fallthru
          _
        %p658 = scmp.lt.s32.totalorder %s21, 3
        %s659 = scalar_select %p658, %s21, 3
        %s660 = smul.addr %s659, 8
        %s661 = smul.addr %s660, 8
        %s662 = scalar_lea.vmem %s5, %s661
        // Predicated region
        $region53: #{deep_pose_estimator_forward.2} parent=39 // pred_check
          %p663 = pneg %p159
        $region54: #{deep_pose_estimator_forward.2} parent=39 // pred_check_branch
          %665 = sbr.rel (%p663) target = $region56
        $region55: #{deep_pose_estimator_forward.2} parent=39 // pred_region
          _
        $region56: #{deep_pose_estimator_forward.2} parent=39 // pred_fallthru
          _
      $region40: #{deep_pose_estimator_forward.2} parent=5 // pred_fallthru
        _
      %p666 = scmp.le.s32.totalorder 2, %s12
      // Predicated region
      $region57: #{deep_pose_estimator_forward.2} parent=5 // pred_check
        %p667 = pneg %p666
      $region58: #{deep_pose_estimator_forward.2} parent=5 // pred_check_branch
        %669 = sbr.rel (%p667) target = $region60
      $region59: #{deep_pose_estimator_forward.2} parent=5 // pred_region
        %s670 = ssub.s32 %s12, 2
        // Predicated region
        $region61: #{deep_pose_estimator_forward.2} parent=59 // pred_check
          %p671 = pneg %p165
        $region62: #{deep_pose_estimator_forward.2} parent=59 // pred_check_branch
          %673 = sbr.rel (%p671) target = $region64
        $region63: #{deep_pose_estimator_forward.2} parent=59 // pred_region
          %p674 = scmp.lt.s32.totalorder %s23, 3
          %s675 = scalar_select %p674, %s23, 3
          %s676 = smul.addr %s675, 8
          %s677 = smul.addr %s676, 8
          %s678 = scalar_lea.vmem %s5, %s677
        $region64: #{deep_pose_estimator_forward.2} parent=59 // pred_fallthru
          _
      $region60: #{deep_pose_estimator_forward.2} parent=5 // pred_fallthru
        _
    $region6: #{deep_pose_estimator_forward.2} parent=1 // loop_footer
      %s16 = sadd.s32 1, %s12
    $region7: #{deep_pose_estimator_forward.2} parent=1 // loop_footer_branch
      %11 = sbr.rel target = $region3
    $region8: #{deep_pose_estimator_forward.2} parent=1 // loop_exit
      _
    %679 = vsyncpa [#allocation4], 1
    %s680 = scalar_lea.sflag [#allocation4], 1
    %681 = vsyncpa %s680, 1

// kernel: deep_pose_estimator_forward.3
$region0: #{deep_pose_estimator_forward.3}
  #allocation0 [shape = 'u32[]', space=smem, size = 0x4, offset = 0x4, fixed_abs, tag = 'smem constant byte address 0x4 - core index']
  #allocation1 [shape = 'u32[144,128]{1,0:T(1,128)}', space=vmem, size = 0x12000, scoped, tag = 'internal scratch']
  #allocation2 [shape = 'f32[1,1]{1,0:T(1,128)S(1)}', space=vmem, size = 0x200, scoped, tag = 'scoped memory for deep_pose_estimator_forward.3']
  %s0 = inlined_call_operand.vmem [shape: bf16[4,8,128], index: 0, kind: input, shape index: {}]
  %s1 = inlined_call_operand.vmem [shape: bf16[64,8], index: 1, kind: input, shape index: {}]
  %s2 = inlined_call_operand.vmem [shape: f32[64,1], index: 2, kind: input, shape index: {}]
  %s3 = inlined_call_operand.vmem [shape: bf16[4,64,64], index: 3, kind: input, shape index: {}]
  %s4 = inlined_call_operand.vmem [shape: f32[64,1], index: 4, kind: input, shape index: {}]
  %s5 = inlined_call_operand.vmem [shape: bf16[8,64], index: 5, kind: input, shape index: {}]
  %s6 = inlined_call_operand.<no memory space> [shape: f32[1,1], index: 6, kind: input, shape index: {}]
  %s7 = inlined_call_operand.vmem [shape: f32[4,1,128], index: 7, kind: output, shape index: {}]
  %s8 = sld [smem:[#allocation0]]
  $region61: #{deep_pose_estimator_forward.3} parent=0
    _
  %s10 = ssub.s32 1, %s8
  %s11 = scalar_select 0, %s10, %s8
  %v12 = vstv %s6
  %13 = vst [vmem:[#allocation2] sm:$0x1] %v12
  loop: start=0, step=1, limit=6
  $region2: #{deep_pose_estimator_forward.3} parent=0 // loop_pre_header
    _
  $region3: #{deep_pose_estimator_forward.3} parent=0 // loop_header
    %s15 = sphi 0, %s19
    %p16 = scmp.ge.s32.totalorder %s15, 6
    %s22 = sphi 0, %s34
    %s23 = sphi 0, %s30
    %s24 = sphi 0, %s22
    %s25 = sphi 0, %s23
    %s26 = sphi 0, %s24
    %s27 = sphi 0, %s25
    %s39 = sphi 0, %s41
    %s42 = sphi 0, %s39
    %s43 = sphi 0, %s42
    %s59 = sphi 0, %s43
    %s63 = sphi 0, %s63
    %s65 = sphi 0, %s63
    %s66 = sphi 0, %s65
    %s80 = sphi 0, %s66
    %s84 = sphi 0, %s84
    %s86 = sphi 0, %s84
    %s87 = sphi 0, %s86
    %s101 = sphi 0, %s87
    %s107 = sphi 0, %s109
    %s110 = sphi 0, %s107
    %s111 = sphi 0, %s110
    %s127 = sphi 0, %s111
    %s131 = sphi 0, %s131
    %s133 = sphi 0, %s131
    %s134 = sphi 0, %s133
    %s148 = sphi 0, %s134
    %s152 = sphi 0, %s152
    %s154 = sphi 0, %s152
    %s155 = sphi 0, %s154
    %s169 = sphi 0, %s155
    %s173 = sphi 0, %s173
    %s175 = sphi 0, %s173
    %s176 = sphi 0, %s175
    %s190 = sphi 0, %s176
    %s198 = sphi 0, %s200
    %s201 = sphi 0, %s198
    %s202 = sphi 0, %s201
    %s218 = sphi 0, %s202
  $region4: #{deep_pose_estimator_forward.3} parent=0 // loop_header_branch
    %18 = sbr.rel (%p16) target = $region8
  $region5: #{deep_pose_estimator_forward.3} parent=0 // loop_body
    %s20 = ssub.s32 %s15, 1
    %s21 = ssub.s32 %s15, 2
    %s28 = sadd.s32 1, %s23
    %p29 = scmp.ge.s32.totalorder %s28, 1
    %s30 = scalar_select %p29, 0, %s28
    %s31 = sadd.s32 1, %s22
    %s32 = scalar_select %p29, %s31, %s22
    %p33 = scmp.ge.s32.totalorder %s32, 4
    %s34 = scalar_select %p33, 0, %s32
    %s35 = ssub.s32 %s22, %s34
    %s36 = ssub.s32 %s23, %s30
    %s37 = sor.u32 %s35, %s36
    %p38 = scmp.eq.s32.totalorder %s37, 0
    %s40 = sadd.s32 %s39, 1
    %s41 = scalar_select %p38, %s39, %s40
    %p44 = pneg %p38
    %p45 = scmp.eq.s32.totalorder %s15, 3
    %p46 = por %p44, %p45
    %p47 = scmp.ne.s32.totalorder %s39, %s42
    %p48 = scmp.eq.s32.totalorder %s15, 0
    %p49 = por %p47, %p48
    %p50 = scmp.ne.s32.totalorder %s39, %s42
    %p51 = scmp.eq.s32.totalorder %s20, 3
    %p52 = por %p50, %p51
    %p53 = scmp.ne.s32.totalorder %s42, %s43
    %p54 = scmp.eq.s32.totalorder %s20, 0
    %p55 = por %p53, %p54
    %p56 = scmp.ne.s32.totalorder %s42, %s43
    %p57 = scmp.eq.s32.totalorder %s21, 3
    %p58 = por %p56, %p57
    %p60 = scmp.ne.s32.totalorder %s43, %s59
    %p61 = scmp.eq.s32.totalorder %s21, 0
    %p62 = por %p60, %p61
    %s64 = sadd.s32 %s63, 1
    %p67 = scmp.eq.s32.totalorder %s15, 3
    %p68 = scmp.ne.s32.totalorder %s63, %s65
    %p69 = scmp.eq.s32.totalorder %s15, 0
    %p70 = por %p68, %p69
    %p71 = scmp.ne.s32.totalorder %s63, %s65
    %p72 = scmp.eq.s32.totalorder %s20, 3
    %p73 = por %p71, %p72
    %p74 = scmp.ne.s32.totalorder %s65, %s66
    %p75 = scmp.eq.s32.totalorder %s20, 0
    %p76 = por %p74, %p75
    %p77 = scmp.ne.s32.totalorder %s65, %s66
    %p78 = scmp.eq.s32.totalorder %s21, 3
    %p79 = por %p77, %p78
    %p81 = scmp.ne.s32.totalorder %s66, %s80
    %p82 = scmp.eq.s32.totalorder %s21, 0
    %p83 = por %p81, %p82
    %s85 = sadd.s32 %s84, 1
    %p88 = scmp.eq.s32.totalorder %s15, 3
    %p89 = scmp.ne.s32.totalorder %s84, %s86
    %p90 = scmp.eq.s32.totalorder %s15, 0
    %p91 = por %p89, %p90
    %p92 = scmp.ne.s32.totalorder %s84, %s86
    %p93 = scmp.eq.s32.totalorder %s20, 3
    %p94 = por %p92, %p93
    %p95 = scmp.ne.s32.totalorder %s86, %s87
    %p96 = scmp.eq.s32.totalorder %s20, 0
    %p97 = por %p95, %p96
    %p98 = scmp.ne.s32.totalorder %s86, %s87
    %p99 = scmp.eq.s32.totalorder %s21, 3
    %p100 = por %p98, %p99
    %p102 = scmp.ne.s32.totalorder %s87, %s101
    %p103 = scmp.eq.s32.totalorder %s21, 0
    %p104 = por %p102, %p103
    %s105 = ssub.s32 %s22, %s34
    %p106 = scmp.eq.s32.totalorder %s105, 0
    %s108 = sadd.s32 %s107, 1
    %s109 = scalar_select %p106, %s107, %s108
    %p112 = pneg %p106
    %p113 = scmp.eq.s32.totalorder %s15, 3
    %p114 = por %p112, %p113
    %p115 = scmp.ne.s32.totalorder %s107, %s110
    %p116 = scmp.eq.s32.totalorder %s15, 0
    %p117 = por %p115, %p116
    %p118 = scmp.ne.s32.totalorder %s107, %s110
    %p119 = scmp.eq.s32.totalorder %s20, 3
    %p120 = por %p118, %p119
    %p121 = scmp.ne.s32.totalorder %s110, %s111
    %p122 = scmp.eq.s32.totalorder %s20, 0
    %p123 = por %p121, %p122
    %p124 = scmp.ne.s32.totalorder %s110, %s111
    %p125 = scmp.eq.s32.totalorder %s21, 3
    %p126 = por %p124, %p125
    %p128 = scmp.ne.s32.totalorder %s111, %s127
    %p129 = scmp.eq.s32.totalorder %s21, 0
    %p130 = por %p128, %p129
    %s132 = sadd.s32 %s131, 1
    %p135 = scmp.eq.s32.totalorder %s15, 3
    %p136 = scmp.ne.s32.totalorder %s131, %s133
    %p137 = scmp.eq.s32.totalorder %s15, 0
    %p138 = por %p136, %p137
    %p139 = scmp.ne.s32.totalorder %s131, %s133
    %p140 = scmp.eq.s32.totalorder %s20, 3
    %p141 = por %p139, %p140
    %p142 = scmp.ne.s32.totalorder %s133, %s134
    %p143 = scmp.eq.s32.totalorder %s20, 0
    %p144 = por %p142, %p143
    %p145 = scmp.ne.s32.totalorder %s133, %s134
    %p146 = scmp.eq.s32.totalorder %s21, 3
    %p147 = por %p145, %p146
    %p149 = scmp.ne.s32.totalorder %s134, %s148
    %p150 = scmp.eq.s32.totalorder %s21, 0
    %p151 = por %p149, %p150
    %s153 = sadd.s32 %s152, 1
    %p156 = scmp.eq.s32.totalorder %s15, 3
    %p157 = scmp.ne.s32.totalorder %s152, %s154
    %p158 = scmp.eq.s32.totalorder %s15, 0
    %p159 = por %p157, %p158
    %p160 = scmp.ne.s32.totalorder %s152, %s154
    %p161 = scmp.eq.s32.totalorder %s20, 3
    %p162 = por %p160, %p161
    %p163 = scmp.ne.s32.totalorder %s154, %s155
    %p164 = scmp.eq.s32.totalorder %s20, 0
    %p165 = por %p163, %p164
    %p166 = scmp.ne.s32.totalorder %s154, %s155
    %p167 = scmp.eq.s32.totalorder %s21, 3
    %p168 = por %p166, %p167
    %p170 = scmp.ne.s32.totalorder %s155, %s169
    %p171 = scmp.eq.s32.totalorder %s21, 0
    %p172 = por %p170, %p171
    %s174 = sadd.s32 %s173, 1
    %p177 = scmp.eq.s32.totalorder %s15, 3
    %p178 = scmp.ne.s32.totalorder %s173, %s175
    %p179 = scmp.eq.s32.totalorder %s15, 0
    %p180 = por %p178, %p179
    %p181 = scmp.ne.s32.totalorder %s173, %s175
    %p182 = scmp.eq.s32.totalorder %s20, 3
    %p183 = por %p181, %p182
    %p184 = scmp.ne.s32.totalorder %s175, %s176
    %p185 = scmp.eq.s32.totalorder %s20, 0
    %p186 = por %p184, %p185
    %p187 = scmp.ne.s32.totalorder %s175, %s176
    %p188 = scmp.eq.s32.totalorder %s21, 3
    %p189 = por %p187, %p188
    %p191 = scmp.ne.s32.totalorder %s176, %s190
    %p192 = scmp.eq.s32.totalorder %s21, 0
    %p193 = por %p191, %p192
    %s194 = ssub.s32 %s22, %s34
    %s195 = ssub.s32 %s23, %s30
    %s196 = sor.u32 %s194, %s195
    %p197 = scmp.eq.s32.totalorder %s196, 0
    %s199 = sadd.s32 %s198, 1
    %s200 = scalar_select %p197, %s198, %s199
    %p203 = pneg %p197
    %p204 = scmp.eq.s32.totalorder %s15, 3
    %p205 = por %p203, %p204
    %p206 = scmp.ne.s32.totalorder %s198, %s201
    %p207 = scmp.eq.s32.totalorder %s15, 0
    %p208 = por %p206, %p207
    %p209 = scmp.ne.s32.totalorder %s198, %s201
    %p210 = scmp.eq.s32.totalorder %s20, 3
    %p211 = por %p209, %p210
    %p212 = scmp.ne.s32.totalorder %s201, %s202
    %p213 = scmp.eq.s32.totalorder %s20, 0
    %p214 = por %p212, %p213
    %p215 = scmp.ne.s32.totalorder %s201, %s202
    %p216 = scmp.eq.s32.totalorder %s21, 3
    %p217 = por %p215, %p216
    %p219 = scmp.ne.s32.totalorder %s202, %s218
    %p220 = scmp.eq.s32.totalorder %s21, 0
    %p221 = por %p219, %p220
    %p222 = scmp.le.s32.totalorder 1, %s15
    %p223 = scmp.lt.s32.totalorder %s15, 5
    %p224 = pnand %p222, %p223
    %p225 = pneg %p224
    // Predicated region
    $region9: #{deep_pose_estimator_forward.3} parent=5 // pred_check
      _
    $region10: #{deep_pose_estimator_forward.3} parent=5 // pred_check_branch
      %227 = sbr.rel (%p224) target = $region12
    $region11: #{deep_pose_estimator_forward.3} parent=5 // pred_region
      %s228 = ssub.s32 %s15, 1
      // Predicated region
      $region13: #{deep_pose_estimator_forward.3} parent=11 // pred_check
        %p229 = pneg %p76
      $region14: #{deep_pose_estimator_forward.3} parent=11 // pred_check_branch
        %231 = sbr.rel (%p229) target = $region16
      $region15: #{deep_pose_estimator_forward.3} parent=11 // pred_region
        _
      $region16: #{deep_pose_estimator_forward.3} parent=11 // pred_fallthru
        _
      // Predicated region
      $region17: #{deep_pose_estimator_forward.3} parent=11 // pred_check
        %p232 = pneg %p97
      $region18: #{deep_pose_estimator_forward.3} parent=11 // pred_check_branch
        %234 = sbr.rel (%p232) target = $region20
      $region19: #{deep_pose_estimator_forward.3} parent=11 // pred_region
        _
      $region20: #{deep_pose_estimator_forward.3} parent=11 // pred_fallthru
        _
      // Predicated region
      $region21: #{deep_pose_estimator_forward.3} parent=11 // pred_check
        %p235 = pneg %p144
      $region22: #{deep_pose_estimator_forward.3} parent=11 // pred_check_branch
        %237 = sbr.rel (%p235) target = $region24
      $region23: #{deep_pose_estimator_forward.3} parent=11 // pred_region
        _
      $region24: #{deep_pose_estimator_forward.3} parent=11 // pred_fallthru
        _
      // Predicated region
      $region25: #{deep_pose_estimator_forward.3} parent=11 // pred_check
        %p238 = pneg %p165
      $region26: #{deep_pose_estimator_forward.3} parent=11 // pred_check_branch
        %240 = sbr.rel (%p238) target = $region28
      $region27: #{deep_pose_estimator_forward.3} parent=11 // pred_region
        _
      $region28: #{deep_pose_estimator_forward.3} parent=11 // pred_fallthru
        _
      // Predicated region
      $region29: #{deep_pose_estimator_forward.3} parent=11 // pred_check
        %p241 = pneg %p186
      $region30: #{deep_pose_estimator_forward.3} parent=11 // pred_check_branch
        %243 = sbr.rel (%p241) target = $region32
      $region31: #{deep_pose_estimator_forward.3} parent=11 // pred_region
        _
      $region32: #{deep_pose_estimator_forward.3} parent=11 // pred_fallthru
        _
    $region12: #{deep_pose_estimator_forward.3} parent=5 // pred_fallthru
      _
    %p244 = scmp.lt.s32.totalorder %s15, 4
    // Predicated region
    $region33: #{deep_pose_estimator_forward.3} parent=5 // pred_check
      %p245 = pneg %p244
    $region34: #{deep_pose_estimator_forward.3} parent=5 // pred_check_branch
      %247 = sbr.rel (%p245) target = $region36
    $region35: #{deep_pose_estimator_forward.3} parent=5 // pred_region
      // Predicated region
      $region37: #{deep_pose_estimator_forward.3} parent=35 // pred_check
        %p248 = pneg %p49
      $region38: #{deep_pose_estimator_forward.3} parent=35 // pred_check_branch
        %250 = sbr.rel (%p248) target = $region40
      $region39: #{deep_pose_estimator_forward.3} parent=35 // pred_region
        %p251 = scmp.lt.s32.totalorder %s22, 3
        %s252 = scalar_select %p251, %s22, 3
        %p253 = scmp.lt.s32.totalorder %s23, 0
        %s254 = scalar_select %p253, %s23, 0
        %s255 = sadd.s32 %s254, %s252
        %s256 = smul.addr %s255, 4
        %s257 = scalar_lea.vmem %s0, %s256
      $region40: #{deep_pose_estimator_forward.3} parent=35 // pred_fallthru
        _
      // Predicated region
      $region41: #{deep_pose_estimator_forward.3} parent=35 // pred_check
        %p258 = pneg %p117
      $region42: #{deep_pose_estimator_forward.3} parent=35 // pred_check_branch
        %260 = sbr.rel (%p258) target = $region44
      $region43: #{deep_pose_estimator_forward.3} parent=35 // pred_region
        %p261 = scmp.lt.s32.totalorder %s22, 3
        %s262 = scalar_select %p261, %s22, 3
        %s263 = smul.addr %s262, 8
        %s264 = smul.addr %s263, 4
        %s265 = scalar_lea.vmem %s3, %s264
      $region44: #{deep_pose_estimator_forward.3} parent=35 // pred_fallthru
        _
    $region36: #{deep_pose_estimator_forward.3} parent=5 // pred_fallthru
      _
    %p266 = scmp.le.s32.totalorder 1, %s15
    %p267 = scmp.lt.s32.totalorder %s15, 5
    %p268 = pnand %p266, %p267
    %p269 = pneg %p268
    // Predicated region
    $region45: #{deep_pose_estimator_forward.3} parent=5 // pred_check
      _
    $region46: #{deep_pose_estimator_forward.3} parent=5 // pred_check_branch
      %271 = sbr.rel (%p268) target = $region48
    $region47: #{deep_pose_estimator_forward.3} parent=5 // pred_region
      %s272 = ssub.s32 %s15, 1
      %p273 = scmp.lt.s32.totalorder %s24, 3
      %s274 = scalar_select %p273, %s24, 3
      %p275 = scmp.lt.s32.totalorder %s25, 0
      %s276 = scalar_select %p275, %s25, 0
      %s277 = sadd.s32 %s276, %s274
      %s278 = smul.addr %s277, 4
      %s279 = scalar_lea.vmem %s0, %s278
      %p280 = pneg %p55
      %p281 = pneg %p52
      %p282 = pneg %p76
      %p283 = pneg %p73
      %p284 = pneg %p97
      %p285 = pneg %p94
      %p286 = scmp.lt.s32.totalorder %s24, 3
      %s287 = scalar_select %p286, %s24, 3
      %s288 = smul.addr %s287, 8
      %s289 = smul.addr %s288, 4
      %s290 = scalar_lea.vmem %s3, %s289
      %p291 = pneg %p123
      %p292 = pneg %p120
      %p293 = pneg %p144
      %p294 = pneg %p141
      %p295 = pneg %p165
      %p296 = pneg %p162
      %p297 = pneg %p186
      %p298 = pneg %p183
      %p299 = pneg %p214
      %p300 = pneg %p211
      %p301 = scmp.lt.s32.totalorder %s24, 3
      %s302 = scalar_select %p301, %s24, 3
      %p303 = scmp.lt.s32.totalorder %s25, 0
      %s304 = scalar_select %p303, %s25, 0
      %s305 = sadd.s32 %s304, %s302
      %s306 = scalar_lea.vmem %s7, %s305
      %p307 = scmp.lt.s32.totalorder %s24, 3
      %s308 = scalar_select %p307, %s24, 3
      %p309 = scmp.lt.s32.totalorder %s25, 0
      %s310 = scalar_select %p309, %s25, 0
      %s311 = sadd.s32 %s310, %s308
      %s312 = smul.addr %s311, 4
      %s313 = scalar_lea.vmem %s0, %s312
      %p314 = scmp.lt.s32.totalorder %s24, 3
      %s315 = scalar_select %p314, %s24, 3
      %s316 = smul.addr %s315, 8
      %s317 = smul.addr %s316, 4
      %s318 = scalar_lea.vmem %s3, %s317
      %p319 = scmp.lt.s32.totalorder %s24, 3
      %s320 = scalar_select %p319, %s24, 3
      %p321 = scmp.lt.s32.totalorder %s25, 0
      %s322 = scalar_select %p321, %s25, 0
      %s323 = sadd.s32 %s322, %s320
      %s324 = scalar_lea.vmem %s7, %s323
      %v326 = vld [vmem:[%s313] sm:$0xf]
      %v327 = vld [vmem:[%s1] sm:$0xf]
      %v328 = vld [vmem:[%s1 + $0x4] sm:$0xf]
      %v329 = vld [vmem:[%s1 + $0x8] sm:$0xf]
      %v330 = vld [vmem:[%s1 + $0xc] sm:$0xf]
      %v331 = vld [vmem:[%s1 + $0x10] sm:$0xf]
      %v332 = vld [vmem:[%s1 + $0x14] sm:$0xf]
      %v333 = vld [vmem:[%s1 + $0x18] sm:$0xf]
      %v334 = vld [vmem:[%s1 + $0x1c] sm:$0xf]
      %v335 = vld [vmem:[%s2] sm:$0xff]
      %v336 = vld [vmem:[%s2 + $0x8] sm:$0xff]
      %v337 = vld [vmem:[%s2 + $0x10] sm:$0xff]
      %v338 = vld [vmem:[%s2 + $0x18] sm:$0xff]
      %v339 = vld [vmem:[%s2 + $0x20] sm:$0xff]
      %v340 = vld [vmem:[%s2 + $0x28] sm:$0xff]
      %v341 = vld [vmem:[%s2 + $0x30] sm:$0xff]
      %v342 = vld [vmem:[%s2 + $0x38] sm:$0xff]
      %344 = vset.pattern.permute.xlu0 0
      %345 = vperm.xlu0 %344, %v335
      %v346 = vpop.permute.xlu0 %345
      %349 = vset.pattern.permute.xlu0 0
      %350 = vperm.xlu0 %349, %v336
      %v351 = vpop.permute.xlu0 %350
      %354 = vset.pattern.permute.xlu0 0
      %355 = vperm.xlu0 %354, %v337
      %v356 = vpop.permute.xlu0 %355
      %359 = vset.pattern.permute.xlu0 0
      %360 = vperm.xlu0 %359, %v338
      %v361 = vpop.permute.xlu0 %360
      %364 = vset.pattern.permute.xlu0 0
      %365 = vperm.xlu0 %364, %v339
      %v366 = vpop.permute.xlu0 %365
      %369 = vset.pattern.permute.xlu0 0
      %370 = vperm.xlu0 %369, %v340
      %v371 = vpop.permute.xlu0 %370
      %374 = vset.pattern.permute.xlu0 0
      %375 = vperm.xlu0 %374, %v341
      %v376 = vpop.permute.xlu0 %375
      %379 = vset.pattern.permute.xlu0 0
      %380 = vperm.xlu0 %379, %v342
      %v381 = vpop.permute.xlu0 %380
      %v391 = vunpack.c.l.b16 %v327
      %v392 = vunpack.c.l.b16 %v328
      %v393 = vunpack.c.l.b16 %v329
      %v394 = vunpack.c.l.b16 %v330
      %v395 = vunpack.c.l.b16 %v331
      %v396 = vunpack.c.l.b16 %v332
      %v397 = vunpack.c.l.b16 %v333
      %v398 = vunpack.c.l.b16 %v334
      %v399 = vpack.c.b16 %v392, %v391
      %v400 = vpack.c.b16 %v394, %v393
      %v401 = vpack.c.b16 %v396, %v395
      %v402 = vpack.c.b16 %v398, %v397
      %vm403 = vcmask 64512
      %v405 = vsel %vm403, %v399, 0
      %v408 = vsel %vm403, %v400, 0
      %v411 = vsel %vm403, %v401, 0
      %v414 = vsel %vm403, %v402, 0
      %vm416 = vcmask 1043456
      %v418 = vsel %vm416, %v326, 0
      %420 = vmatprep.subr.bf16.mxu0 0
      %421 = vmatpush1.bf16.msra.mxu0 %v418
      %422 = vmatprep.subr.bf16.mxu0 0
      %423 = vmatpush1.bf16.msra.mxu0 0
      %424 = vmatprep.subr.bf16.mxu0 0
      %425 = vmatpush1.bf16.msra.mxu0 0
      %426 = vmatprep.subr.bf16.mxu0 0
      %427 = vmatpush1.bf16.msra.mxu0 0
      %428 = vmatprep.subr.bf16.mxu0 0
      %429 = vmatpush1.bf16.msra.mxu0 0
      %430 = vmatprep.subr.bf16.mxu0 0
      %431 = vmatpush1.bf16.msra.mxu0 0
      %432 = vmatprep.subr.bf16.mxu0 0
      %433 = vmatpush1.bf16.msra.mxu0 0
      %434 = vmatprep.subr.bf16.mxu0 0
      %435 = vmatpush1.bf16.msra.mxu0 0
      %436 = vmatprep.subr.bf16.mxu0 0
      %437 = vmatpush1.bf16.msra.mxu0 0
      %438 = vmatprep.subr.bf16.mxu0 0
      %439 = vmatpush1.bf16.msra.mxu0 0
      %440 = vmatprep.subr.bf16.mxu0 0
      %441 = vmatpush1.bf16.msra.mxu0 0
      %442 = vmatprep.subr.bf16.mxu0 0
      %443 = vmatpush1.bf16.msra.mxu0 0
      %444 = vmatprep.subr.bf16.mxu0 0
      %445 = vmatpush1.bf16.msra.mxu0 0
      %446 = vmatprep.subr.bf16.mxu0 0
      %447 = vmatpush1.bf16.msra.mxu0 0
      %448 = vmatprep.subr.bf16.mxu0 0
      %449 = vmatpush1.bf16.msra.mxu0 0
      %450 = vmatprep.subr.bf16.mxu0 0
      %451 = vmatpush1.bf16.msra.mxu0 0
      %452 = vmatprep.mubr.bf16.mxu0 0
      %453 = vmatmul.mubr.bf16.gmra.mrb[0].mxu0 %v405
      %v454 = vpop.f32.mrb[0].mxu0
      %v455 = vadd.f32 %v346, %v454
      %v456 = vpop.f32.mrb[0].mxu0
      %v457 = vpop.f32.mrb[0].mxu0
      %v458 = vadd.f32 %v351, %v457
      %v459 = vpop.f32.mrb[0].mxu0
      %460 = vmatprep.mubr.bf16.mxu0 0
      %461 = vmatmul.mubr.bf16.gmra.mrb[0].mxu0 %v408
      %v462 = vpop.f32.mrb[0].mxu0
      %v463 = vadd.f32 %v356, %v462
      %v464 = vpop.f32.mrb[0].mxu0
      %v465 = vpop.f32.mrb[0].mxu0
      %v466 = vadd.f32 %v361, %v465
      %v467 = vpop.f32.mrb[0].mxu0
      %468 = vmatprep.mubr.bf16.mxu0 0
      %469 = vmatmul.mubr.bf16.gmra.mrb[0].mxu0 %v411
      %v470 = vpop.f32.mrb[0].mxu0
      %v471 = vadd.f32 %v366, %v470
      %v472 = vpop.f32.mrb[0].mxu0
      %v473 = vpop.f32.mrb[0].mxu0
      %v474 = vadd.f32 %v371, %v473
      %v475 = vpop.f32.mrb[0].mxu0
      %476 = vmatprep.mubr.bf16.mxu0 0
      %477 = vmatmul.mubr.bf16.gmra.mrb[0].mxu0 %v414
      %v478 = vpop.f32.mrb[0].mxu0
      %v479 = vadd.f32 %v376, %v478
      %v480 = vpop.f32.mrb[0].mxu0
      %v481 = vpop.f32.mrb[0].mxu0
      %v482 = vadd.f32 %v381, %v481
      %v483 = vpop.f32.mrb[0].mxu0
      %484 = vdwg.mxu0
      %v485 = vmax.f32 %v455, 0.0
      %v486 = vmax.f32 %v458, 0.0
      %v487 = vmax.f32 %v463, 0.0
      %v488 = vmax.f32 %v466, 0.0
      %v489 = vmax.f32 %v471, 0.0
      %v490 = vmax.f32 %v474, 0.0
      %v491 = vmax.f32 %v479, 0.0
      %v492 = vmax.f32 %v482, 0.0
      %v493 = vpack.c.bf16 %v486, %v485
      %v494 = vpack.c.bf16 %v488, %v487
      %v495 = vpack.c.bf16 %v490, %v489
      %v496 = vpack.c.bf16 %v492, %v491
      %v497 = vld [vmem:[%s318] sm:$0xf]
      %v498 = vld [vmem:[%s318 + $0x4] sm:$0xf]
      %v499 = vld [vmem:[%s318 + $0x8] sm:$0xf]
      %v500 = vld [vmem:[%s318 + $0xc] sm:$0xf]
      %v501 = vld [vmem:[%s318 + $0x10] sm:$0xf]
      %v502 = vld [vmem:[%s318 + $0x14] sm:$0xf]
      %v503 = vld [vmem:[%s318 + $0x18] sm:$0xf]
      %v504 = vld [vmem:[%s318 + $0x1c] sm:$0xf]
      %v505 = vld [vmem:[%s4] sm:$0xff]
      %v506 = vld [vmem:[%s4 + $0x8] sm:$0xff]
      %v507 = vld [vmem:[%s4 + $0x10] sm:$0xff]
      %v508 = vld [vmem:[%s4 + $0x18] sm:$0xff]
      %v509 = vld [vmem:[%s4 + $0x20] sm:$0xff]
      %v510 = vld [vmem:[%s4 + $0x28] sm:$0xff]
      %v511 = vld [vmem:[%s4 + $0x30] sm:$0xff]
      %v512 = vld [vmem:[%s4 + $0x38] sm:$0xff]
      %514 = vset.pattern.permute.xlu0 0
      %515 = vperm.xlu0 %514, %v505
      %v516 = vpop.permute.xlu0 %515
      %519 = vset.pattern.permute.xlu0 0
      %520 = vperm.xlu0 %519, %v506
      %v521 = vpop.permute.xlu0 %520
      %524 = vset.pattern.permute.xlu0 0
      %525 = vperm.xlu0 %524, %v507
      %v526 = vpop.permute.xlu0 %525
      %529 = vset.pattern.permute.xlu0 0
      %530 = vperm.xlu0 %529, %v508
      %v531 = vpop.permute.xlu0 %530
      %534 = vset.pattern.permute.xlu0 0
      %535 = vperm.xlu0 %534, %v509
      %v536 = vpop.permute.xlu0 %535
      %539 = vset.pattern.permute.xlu0 0
      %540 = vperm.xlu0 %539, %v510
      %v541 = vpop.permute.xlu0 %540
      %544 = vset.pattern.permute.xlu0 0
      %545 = vperm.xlu0 %544, %v511
      %v546 = vpop.permute.xlu0 %545
      %549 = vset.pattern.permute.xlu0 0
      %550 = vperm.xlu0 %549, %v512
      %v551 = vpop.permute.xlu0 %550
      %v561 = vunpack.c.l.b16 %v497
      %v562 = vunpack.c.l.b16 %v498
      %v563 = vunpack.c.l.b16 %v499
      %v564 = vunpack.c.l.b16 %v500
      %v565 = vunpack.c.l.b16 %v501
      %v566 = vunpack.c.l.b16 %v502
      %v567 = vunpack.c.l.b16 %v503
      %v568 = vunpack.c.l.b16 %v504
      %v569 = vpack.c.b16 %v562, %v561
      %v570 = vpack.c.b16 %v564, %v563
      %v571 = vpack.c.b16 %v566, %v565
      %v572 = vpack.c.b16 %v568, %v567
      %vm573 = vcmask 523264
      %v575 = vsel %vm573, %v569, 0
      %v578 = vsel %vm573, %v570, 0
      %v581 = vsel %vm573, %v571, 0
      %v584 = vsel %vm573, %v572, 0
      %586 = vmatprep.subr.bf16.mxu0 0
      %587 = vmatpush1.bf16.msra.mxu0 %v493
      %588 = vmatprep.subr.bf16.mxu0 0
      %589 = vmatpush1.bf16.msra.mxu0 %v494
      %590 = vmatprep.subr.bf16.mxu0 0
      %591 = vmatpush1.bf16.msra.mxu0 %v495
      %592 = vmatprep.subr.bf16.mxu0 0
      %593 = vmatpush1.bf16.msra.mxu0 %v496
      %594 = vmatprep.subr.bf16.mxu0 0
      %595 = vmatpush1.bf16.msra.mxu0 0
      %596 = vmatprep.subr.bf16.mxu0 0
      %597 = vmatpush1.bf16.msra.mxu0 0
      %598 = vmatprep.subr.bf16.mxu0 0
      %599 = vmatpush1.bf16.msra.mxu0 0
      %600 = vmatprep.subr.bf16.mxu0 0
      %601 = vmatpush1.bf16.msra.mxu0 0
      %602 = vmatprep.subr.bf16.mxu0 0
      %603 = vmatpush1.bf16.msra.mxu0 0
      %604 = vmatprep.subr.bf16.mxu0 0
      %605 = vmatpush1.bf16.msra.mxu0 0
      %606 = vmatprep.subr.bf16.mxu0 0
      %607 = vmatpush1.bf16.msra.mxu0 0
      %608 = vmatprep.subr.bf16.mxu0 0
      %609 = vmatpush1.bf16.msra.mxu0 0
      %610 = vmatprep.subr.bf16.mxu0 0
      %611 = vmatpush1.bf16.msra.mxu0 0
      %612 = vmatprep.subr.bf16.mxu0 0
      %613 = vmatpush1.bf16.msra.mxu0 0
      %614 = vmatprep.subr.bf16.mxu0 0
      %615 = vmatpush1.bf16.msra.mxu0 0
      %616 = vmatprep.subr.bf16.mxu0 0
      %617 = vmatpush1.bf16.msra.mxu0 0
      %618 = vmatprep.mubr.bf16.mxu0 0
      %619 = vmatmul.mubr.bf16.gmra.mrb[0].mxu0 %v575
      %v620 = vpop.f32.mrb[0].mxu0
      %v621 = vadd.f32 %v516, %v620
      %v622 = vpop.f32.mrb[0].mxu0
      %v623 = vpop.f32.mrb[0].mxu0
      %v624 = vadd.f32 %v521, %v623
      %v625 = vpop.f32.mrb[0].mxu0
      %626 = vmatprep.mubr.bf16.mxu0 0
      %627 = vmatmul.mubr.bf16.gmra.mrb[0].mxu0 %v578
      %v628 = vpop.f32.mrb[0].mxu0
      %v629 = vadd.f32 %v526, %v628
      %v630 = vpop.f32.mrb[0].mxu0
      %v631 = vpop.f32.mrb[0].mxu0
      %v632 = vadd.f32 %v531, %v631
      %v633 = vpop.f32.mrb[0].mxu0
      %634 = vmatprep.mubr.bf16.mxu0 0
      %635 = vmatmul.mubr.bf16.gmra.mrb[0].mxu0 %v581
      %v636 = vpop.f32.mrb[0].mxu0
      %v637 = vadd.f32 %v536, %v636
      %v638 = vpop.f32.mrb[0].mxu0
      %v639 = vpop.f32.mrb[0].mxu0
      %v640 = vadd.f32 %v541, %v639
      %v641 = vpop.f32.mrb[0].mxu0
      %642 = vmatprep.mubr.bf16.mxu0 0
      %643 = vmatmul.mubr.bf16.gmra.mrb[0].mxu0 %v584
      %v644 = vpop.f32.mrb[0].mxu0
      %v645 = vadd.f32 %v546, %v644
      %v646 = vpop.f32.mrb[0].mxu0
      %v647 = vpop.f32.mrb[0].mxu0
      %v648 = vadd.f32 %v551, %v647
      %v649 = vpop.f32.mrb[0].mxu0
      %650 = vdwg.mxu0
      %v651 = vmax.f32 %v621, 0.0
      %v652 = vmax.f32 %v624, 0.0
      %v653 = vmax.f32 %v629, 0.0
      %v654 = vmax.f32 %v632, 0.0
      %v655 = vmax.f32 %v637, 0.0
      %v656 = vmax.f32 %v640, 0.0
      %v657 = vmax.f32 %v645, 0.0
      %v658 = vmax.f32 %v648, 0.0
      %v659 = vpack.c.bf16 %v652, %v651
      %v660 = vpack.c.bf16 %v654, %v653
      %v661 = vpack.c.bf16 %v656, %v655
      %v662 = vpack.c.bf16 %v658, %v657
      %v663 = vld [vmem:[%s5] sm:$0xf]
      %v665 = vsel %vm573, %v663, 0
      %667 = vmatprep.subr.bf16.mxu0 0
      %668 = vmatpush1.bf16.msra.mxu0 %v659
      %669 = vmatprep.subr.bf16.mxu0 0
      %670 = vmatpush1.bf16.msra.mxu0 %v660
      %671 = vmatprep.subr.bf16.mxu0 0
      %672 = vmatpush1.bf16.msra.mxu0 %v661
      %673 = vmatprep.subr.bf16.mxu0 0
      %674 = vmatpush1.bf16.msra.mxu0 %v662
      %675 = vmatprep.subr.bf16.mxu0 0
      %676 = vmatpush1.bf16.msra.mxu0 0
      %677 = vmatprep.subr.bf16.mxu0 0
      %678 = vmatpush1.bf16.msra.mxu0 0
      %679 = vmatprep.subr.bf16.mxu0 0
      %680 = vmatpush1.bf16.msra.mxu0 0
      %681 = vmatprep.subr.bf16.mxu0 0
      %682 = vmatpush1.bf16.msra.mxu0 0
      %683 = vmatprep.subr.bf16.mxu0 0
      %684 = vmatpush1.bf16.msra.mxu0 0
      %685 = vmatprep.subr.bf16.mxu0 0
      %686 = vmatpush1.bf16.msra.mxu0 0
      %687 = vmatprep.subr.bf16.mxu0 0
      %688 = vmatpush1.bf16.msra.mxu0 0
      %689 = vmatprep.subr.bf16.mxu0 0
      %690 = vmatpush1.bf16.msra.mxu0 0
      %691 = vmatprep.subr.bf16.mxu0 0
      %692 = vmatpush1.bf16.msra.mxu0 0
      %693 = vmatprep.subr.bf16.mxu0 0
      %694 = vmatpush1.bf16.msra.mxu0 0
      %695 = vmatprep.subr.bf16.mxu0 0
      %696 = vmatpush1.bf16.msra.mxu0 0
      %697 = vmatprep.subr.bf16.mxu0 0
      %698 = vmatpush1.bf16.msra.mxu0 0
      %699 = vmatprep.mubr.bf16.mxu0 0
      %700 = vmatmul.mubr.bf16.gmra.mrb[0].mxu0 %v665
      %v701 = vpop.f32.mrb[0].mxu0
      %v702 = vadd.f32 0.0, %v701
      %v703 = vpop.f32.mrb[0].mxu0
      %v704 = vpop.f32.mrb[0].mxu0
      %v705 = vpop.f32.mrb[0].mxu0
      %706 = vdwg.mxu0
      %v707 = vld [vmem:[#allocation2] sm:$0x1]
      %709 = vset.pattern.permute.xlu0 0
      %710 = vperm.xlu0 %709, %v707
      %v711 = vpop.permute.xlu0 %710
      %v713 = vlaneseq
      %v714 = vshrl.u32 %v713, 7
      %v715 = vsub.s32 0, %v714
      %v716 = vrot.slane %v711, %v715
      %v717 = vadd.f32 %v702, %v716
      %v718 = vmax.f32 %v717, 0.0
      %719 = vst [vmem:[%s324] sm:$0x1] %v718
      %p720 = scmp.lt.s32.totalorder %s24, 3
      %s721 = scalar_select %p720, %s24, 3
      %p722 = scmp.lt.s32.totalorder %s25, 0
      %s723 = scalar_select %p722, %s25, 0
      %s724 = sadd.s32 %s723, %s721
      %s725 = scalar_lea.vmem %s7, %s724
      // Predicated region
      $region49: #{deep_pose_estimator_forward.3} parent=47 // pred_check
        %p726 = pneg %p211
      $region50: #{deep_pose_estimator_forward.3} parent=47 // pred_check_branch
        %728 = sbr.rel (%p726) target = $region52
      $region51: #{deep_pose_estimator_forward.3} parent=47 // pred_region
        _
      $region52: #{deep_pose_estimator_forward.3} parent=47 // pred_fallthru
        _
    $region48: #{deep_pose_estimator_forward.3} parent=5 // pred_fallthru
      _
    %p729 = scmp.le.s32.totalorder 2, %s15
    // Predicated region
    $region53: #{deep_pose_estimator_forward.3} parent=5 // pred_check
      %p730 = pneg %p729
    $region54: #{deep_pose_estimator_forward.3} parent=5 // pred_check_branch
      %732 = sbr.rel (%p730) target = $region56
    $region55: #{deep_pose_estimator_forward.3} parent=5 // pred_region
      %s733 = ssub.s32 %s15, 2
      // Predicated region
      $region57: #{deep_pose_estimator_forward.3} parent=55 // pred_check
        %p734 = pneg %p217
      $region58: #{deep_pose_estimator_forward.3} parent=55 // pred_check_branch
        %736 = sbr.rel (%p734) target = $region60
      $region59: #{deep_pose_estimator_forward.3} parent=55 // pred_region
        %p737 = scmp.lt.s32.totalorder %s26, 3
        %s738 = scalar_select %p737, %s26, 3
        %p739 = scmp.lt.s32.totalorder %s27, 0
        %s740 = scalar_select %p739, %s27, 0
        %s741 = sadd.s32 %s740, %s738
        %s742 = scalar_lea.vmem %s7, %s741
      $region60: #{deep_pose_estimator_forward.3} parent=55 // pred_fallthru
        _
    $region56: #{deep_pose_estimator_forward.3} parent=5 // pred_fallthru
      _
  $region6: #{deep_pose_estimator_forward.3} parent=0 // loop_footer
    %s19 = sadd.s32 1, %s15
  $region7: #{deep_pose_estimator_forward.3} parent=0 // loop_footer_branch
    %14 = sbr.rel target = $region3
  $region8: #{deep_pose_estimator_forward.3} parent=0 // loop_exit
    _

</llo_original>
